<compile_context>
chip_gen: v5e
topology: v5e:2x2
jax: 0.10.0
libtpu: 0.0.40
codegen_flags: <defaults>
</compile_context>

<pallas_src>
import functools
import math

import jax
import jax.numpy as jnp
from jax.experimental import pallas as pl
from jax.experimental.pallas import tpu as pltpu


def _ais_kernel(z_ref, logw_ref, zf_ref, *,
                n_steps, step_size, sigma2, zdim, mode_offset):
    """Annealed importance sampling over a fixed bimodal Gaussian mixture.

    Layout: particles on the 128-lane axis, zdim on the sublane axis.
      z_ref   : (D, tile)  initial particles from q = N(0, I)
      logw_ref: (1, tile)  accumulated AIS log importance weights (lane-dense)
      zf_ref  : (D, tile)  final particle positions after annealing
    """
    log2pi = math.log(2.0 * math.pi)
    const_q = -0.5 * zdim * log2pi
    const_p = -0.5 * zdim * (log2pi + math.log(sigma2)) + math.log(0.5)
    inv_sigma2 = 1.0 / sigma2
    a = mode_offset
    inv_n = 1.0 / n_steps
    da2 = zdim * a * a
    # Mode means are +-a*1, so:
    #   sum((z -+ a)^2) = S2 -+ 2a*S1 + D*a^2
    #   grad log p      = -(z - a*(w1 - w2)) / sigma^2      (w1 + w2 = 1)

    z = z_ref[...].astype(jnp.float32)               # (D, tile)
    logw = jnp.zeros((1, z.shape[1]), jnp.float32)   # (1, tile)

    # n_steps is small & static: fully unrolled loop, betas are constants.
    for t in range(1, n_steps + 1):
        beta = t * inv_n

        s1 = jnp.sum(z, axis=0, keepdims=True)       # Sum_d z     (1, tile)
        s2 = jnp.sum(z * z, axis=0, keepdims=True)   # Sum_d z^2   (1, tile)

        lq = -0.5 * s2 + const_q
        e1 = -0.5 * inv_sigma2 * (s2 - 2.0 * a * s1 + da2) + const_p
        e2 = -0.5 * inv_sigma2 * (s2 + 2.0 * a * s1 + da2) + const_p

        m = jnp.maximum(e1, e2)
        u1 = jnp.exp(e1 - m)
        u2 = jnp.exp(e2 - m)
        den = u1 + u2
        lp = m + jnp.log(den)                        # log-mixture density

        # AIS log-weight increment (telescoping geometric path, d(beta)=1/n).
        logw = logw + inv_n * (lp - lq)

        # Deterministic Langevin drift targeting the annealed density pi_beta.
        # TODO(synk): stochastic MCMC noise / MH accept-reject omitted;
        # a deterministic drift transition is used for reproducibility.
        wd = (u1 - u2) / den                         # w1 - w2, (1, tile)
        grad = (beta - 1.0) * z - (beta * inv_sigma2) * (z - a * wd)
        z = z + step_size * grad

    logw_ref[...] = logw
    zf_ref[...] = z.astype(zf_ref.dtype)


def _round_up(x, m):
    return ((x + m - 1) // m) * m


def run_ais_pallas(z_dp, *, n_steps, step_size, sigma2, mode_offset,
                   lane_tile=512):
    """z_dp: (D, P) particles; returns (logw (1, P), z_final (D, P))."""
    D, P = z_dp.shape
    p128 = _round_up(P, 128)
    if p128 <= lane_tile:
        lane_tile = p128
    p_pad = _round_up(P, lane_tile)
    if p_pad != P:
        # Padded particles are zeros -> finite math, results sliced off below.
        z_dp = jnp.pad(z_dp, ((0, 0), (0, p_pad - P)))

    kernel = functools.partial(
        _ais_kernel, n_steps=n_steps, step_size=step_size,
        sigma2=sigma2, zdim=D, mode_offset=mode_offset)

    # VMEM: (D, lane_tile) f32 double-buffered in + two outputs -> well under
    # limits on v5e/v6e/v7x; grid shards the particle axis across TensorCores.
    logw, zf = pl.pallas_call(
        kernel,
        out_shape=(jax.ShapeDtypeStruct((1, p_pad), jnp.float32),
                   jax.ShapeDtypeStruct((D, p_pad), jnp.float32)),
        grid_spec=pltpu.PrefetchScalarGridSpec(
            num_scalar_prefetch=0,
            grid=(p_pad // lane_tile,),
            in_specs=[pl.BlockSpec((D, lane_tile), lambda i: (0, i))],
            out_specs=[pl.BlockSpec((1, lane_tile), lambda i: (0, i)),
                       pl.BlockSpec((D, lane_tile), lambda i: (0, i))]),
        compiler_params=pltpu.CompilerParams(
            dimension_semantics=("parallel",)),
    )(z_dp)
    return logw[:, :P], zf[:, :P]


class FixedBimodalGaussianMixtureAISModelPallas:
    """JAX/Pallas port: q = N(0,I), target = fixed bimodal Gaussian mixture."""

    def __init__(self, batch_size, n_particles, zdim, *,
                 n_ais_steps=16, step_size=0.05,
                 mode_offset=2.0, mode_sigma2=0.25):
        self.B = batch_size
        self.N = n_particles
        self.D = zdim
        self.n_ais_steps = n_ais_steps
        self.step_size = step_size
        self.sigma2 = mode_sigma2
        self.mode_offset = mode_offset   # modes are +-mode_offset * 1

    def forward(self, key):
        # z = self.q.sample((self.B, self.N))  -> shape (B, N, D)
        z = jax.random.normal(key, (self.B, self.N, self.D), jnp.float32)
        # (B, N, D) -> (D, B*N): particles dense on the 128-lane axis.
        z_dp = z.reshape(self.B * self.N, self.D).T

        logw, zf = run_ais_pallas(
            z_dp, n_steps=self.n_ais_steps, step_size=self.step_size,
            sigma2=self.sigma2, mode_offset=self.mode_offset)

        log_w = logw[0].reshape(self.B, self.N)
        z_final = zf.T.reshape(self.B, self.N, self.D)
        # AIS estimate of log Z per batch element.
        log_normalizer = jax.nn.logsumexp(log_w, axis=1) - jnp.log(float(self.N))
        return {
            "z_init": z,
            "z_final": z_final,
            "log_weights": log_w,
            "log_normalizer": log_normalizer,
        }


def _reference_ais(z, *, n_steps, step_size, sigma2, mode_offset):
    """Pure-JAX reference of the same AIS math ((P, D) layout)."""
    P, D = z.shape
    log2pi = math.log(2.0 * math.pi)
    const_q = -0.5 * D * log2pi
    const_p = -0.5 * D * (log2pi + math.log(sigma2)) + math.log(0.5)
    a = mode_offset
    inv_s2 = 1.0 / sigma2
    da2 = D * a * a
    logw = jnp.zeros((P, 1), jnp.float32)
    for t in range(1, n_steps + 1):
        beta = t / n_steps
        s1 = jnp.sum(z, -1, keepdims=True)
        s2 = jnp.sum(z * z, -1, keepdims=True)
        lq = -0.5 * s2 + const_q
        e1 = -0.5 * inv_s2 * (s2 - 2.0 * a * s1 + da2) + const_p
        e2 = -0.5 * inv_s2 * (s2 + 2.0 * a * s1 + da2) + const_p
        m = jnp.maximum(e1, e2)
        u1, u2 = jnp.exp(e1 - m), jnp.exp(e2 - m)
        den = u1 + u2
        lp = m + jnp.log(den)
        logw = logw + (1.0 / n_steps) * (lp - lq)
        wd = (u1 - u2) / den
        grad = (beta - 1.0) * z - (beta * inv_s2) * (z - a * wd)
        z = z + step_size * grad
    return logw, z


if __name__ == "__main__":
    B, N, D = 2, 8, 32
    model = FixedBimodalGaussianMixtureAISModelPallas(B, N, D)

    key = jax.random.PRNGKey(0)
    out = model.forward(key)
    jax.block_until_ready(out)

    # Cross-check the Pallas kernel against the pure-JAX reference.
    z0 = out["z_init"].reshape(B * N, D)
    ref_logw, ref_zf = _reference_ais(
        z0, n_steps=model.n_ais_steps, step_size=model.step_size,
        sigma2=model.sigma2, mode_offset=model.mode_offset)
    assert jnp.allclose(out["log_weights"].reshape(-1, 1), ref_logw,
                        atol=1e-4, rtol=1e-4)
    assert jnp.allclose(out["z_final"].reshape(B * N, D), ref_zf,
                        atol=1e-4, rtol=1e-4)
    assert out["log_normalizer"].shape == (B,)
    assert bool(jnp.all(jnp.isfinite(out["log_normalizer"])))

    print("KERNEL_OK")
</pallas_src>

<mosaic_0001>
module attributes {stable_mosaic.version = 11 : i64} {
  func.func @_ais_kernel(%arg0: i32, %arg1: memref<32x128xf32, #tpu.memory_space<vmem>>, %arg2: memref<1x128xf32, #tpu.memory_space<vmem>>, %arg3: memref<32x128xf32, #tpu.memory_space<vmem>>) attributes {dimension_semantics = [#tpu.dimension_semantics<parallel>], iteration_bounds = array<i64: 1>, scalar_prefetch = 0 : i64, scratch_operands = 0 : i64, tpu.core_type = #tpu.core_type<tc>, window_params = [{transform_indices = @transform_0, window_bounds = array<i64: 32, 128>}, {transform_indices = @transform_1, window_bounds = array<i64: 1, 128>}, {transform_indices = @transform_2, window_bounds = array<i64: 32, 128>}]} {
    %c0 = arith.constant 0 : index
    %c0_0 = arith.constant 0 : index
    %0 = vector.load %arg1[%c0, %c0_0] : memref<32x128xf32, #tpu.memory_space<vmem>>, vector<32x128xf32>
    %cst = arith.constant 0.000000e+00 : f32
    %1 = vector.broadcast %cst : f32 to vector<1x128xf32>
    %cst_1 = arith.constant dense<0.000000e+00> : vector<128xf32>
    %2 = vector.multi_reduction <add>, %0, %cst_1 [0] : vector<32x128xf32> to vector<128xf32>
    %3 = vector.shape_cast %2 : vector<128xf32> to vector<1x128xf32>
    %4 = arith.mulf %0, %0 : vector<32x128xf32>
    %cst_2 = arith.constant dense<0.000000e+00> : vector<128xf32>
    %5 = vector.multi_reduction <add>, %4, %cst_2 [0] : vector<32x128xf32> to vector<128xf32>
    %6 = vector.shape_cast %5 : vector<128xf32> to vector<1x128xf32>
    %cst_3 = arith.constant -5.000000e-01 : f32
    %7 = vector.broadcast %cst_3 : f32 to vector<1x128xf32>
    %8 = arith.mulf %7, %6 : vector<1x128xf32>
    %cst_4 = arith.constant -29.4060326 : f32
    %9 = vector.broadcast %cst_4 : f32 to vector<1x128xf32>
    %10 = arith.addf %8, %9 : vector<1x128xf32>
    %cst_5 = arith.constant 4.000000e+00 : f32
    %11 = vector.broadcast %cst_5 : f32 to vector<1x128xf32>
    %12 = arith.mulf %11, %3 : vector<1x128xf32>
    %13 = arith.subf %6, %12 : vector<1x128xf32>
    %cst_6 = arith.constant 1.280000e+02 : f32
    %14 = vector.broadcast %cst_6 : f32 to vector<1x128xf32>
    %15 = arith.addf %13, %14 : vector<1x128xf32>
    %cst_7 = arith.constant -2.000000e+00 : f32
    %16 = vector.broadcast %cst_7 : f32 to vector<1x128xf32>
    %17 = arith.mulf %16, %15 : vector<1x128xf32>
    %cst_8 = arith.constant -7.91847038 : f32
    %18 = vector.broadcast %cst_8 : f32 to vector<1x128xf32>
    %19 = arith.addf %17, %18 : vector<1x128xf32>
    %cst_9 = arith.constant 4.000000e+00 : f32
    %20 = vector.broadcast %cst_9 : f32 to vector<1x128xf32>
    %21 = arith.mulf %20, %3 : vector<1x128xf32>
    %22 = arith.addf %6, %21 : vector<1x128xf32>
    %cst_10 = arith.constant 1.280000e+02 : f32
    %23 = vector.broadcast %cst_10 : f32 to vector<1x128xf32>
    %24 = arith.addf %22, %23 : vector<1x128xf32>
    %cst_11 = arith.constant -2.000000e+00 : f32
    %25 = vector.broadcast %cst_11 : f32 to vector<1x128xf32>
    %26 = arith.mulf %25, %24 : vector<1x128xf32>
    %cst_12 = arith.constant -7.91847038 : f32
    %27 = vector.broadcast %cst_12 : f32 to vector<1x128xf32>
    %28 = arith.addf %26, %27 : vector<1x128xf32>
    %29 = arith.maximumf %19, %28 : vector<1x128xf32>
    %30 = arith.subf %19, %29 : vector<1x128xf32>
    %31 = math.exp %30 : vector<1x128xf32>
    %32 = arith.subf %28, %29 : vector<1x128xf32>
    %33 = math.exp %32 : vector<1x128xf32>
    %34 = arith.addf %31, %33 : vector<1x128xf32>
    %35 = math.log %34 : vector<1x128xf32>
    %36 = arith.addf %29, %35 : vector<1x128xf32>
    %37 = arith.subf %36, %10 : vector<1x128xf32>
    %cst_13 = arith.constant 6.250000e-02 : f32
    %38 = vector.broadcast %cst_13 : f32 to vector<1x128xf32>
    %39 = arith.mulf %38, %37 : vector<1x128xf32>
    %40 = arith.addf %1, %39 : vector<1x128xf32>
    %41 = arith.subf %31, %33 : vector<1x128xf32>
    %42 = arith.divf %41, %34 : vector<1x128xf32>
    %cst_14 = arith.constant -9.375000e-01 : f32
    %43 = vector.broadcast %cst_14 : f32 to vector<32x128xf32>
    %44 = arith.mulf %43, %0 : vector<32x128xf32>
    %cst_15 = arith.constant 2.000000e+00 : f32
    %45 = vector.broadcast %cst_15 : f32 to vector<1x128xf32>
    %46 = arith.mulf %45, %42 : vector<1x128xf32>
    %47 = vector.broadcast %46 : vector<1x128xf32> to vector<32x128xf32>
    %48 = arith.subf %0, %47 : vector<32x128xf32>
    %cst_16 = arith.constant 2.500000e-01 : f32
    %49 = vector.broadcast %cst_16 : f32 to vector<32x128xf32>
    %50 = arith.mulf %49, %48 : vector<32x128xf32>
    %51 = arith.subf %44, %50 : vector<32x128xf32>
    %cst_17 = arith.constant 5.000000e-02 : f32
    %52 = vector.broadcast %cst_17 : f32 to vector<32x128xf32>
    %53 = arith.mulf %52, %51 : vector<32x128xf32>
    %54 = arith.addf %0, %53 : vector<32x128xf32>
    %cst_18 = arith.constant dense<0.000000e+00> : vector<128xf32>
    %55 = vector.multi_reduction <add>, %54, %cst_18 [0] : vector<32x128xf32> to vector<128xf32>
    %56 = vector.shape_cast %55 : vector<128xf32> to vector<1x128xf32>
    %57 = arith.mulf %54, %54 : vector<32x128xf32>
    %cst_19 = arith.constant dense<0.000000e+00> : vector<128xf32>
    %58 = vector.multi_reduction <add>, %57, %cst_19 [0] : vector<32x128xf32> to vector<128xf32>
    %59 = vector.shape_cast %58 : vector<128xf32> to vector<1x128xf32>
    %cst_20 = arith.constant -5.000000e-01 : f32
    %60 = vector.broadcast %cst_20 : f32 to vector<1x128xf32>
    %61 = arith.mulf %60, %59 : vector<1x128xf32>
    %cst_21 = arith.constant -29.4060326 : f32
    %62 = vector.broadcast %cst_21 : f32 to vector<1x128xf32>
    %63 = arith.addf %61, %62 : vector<1x128xf32>
    %cst_22 = arith.constant 4.000000e+00 : f32
    %64 = vector.broadcast %cst_22 : f32 to vector<1x128xf32>
    %65 = arith.mulf %64, %56 : vector<1x128xf32>
    %66 = arith.subf %59, %65 : vector<1x128xf32>
    %cst_23 = arith.constant 1.280000e+02 : f32
    %67 = vector.broadcast %cst_23 : f32 to vector<1x128xf32>
    %68 = arith.addf %66, %67 : vector<1x128xf32>
    %cst_24 = arith.constant -2.000000e+00 : f32
    %69 = vector.broadcast %cst_24 : f32 to vector<1x128xf32>
    %70 = arith.mulf %69, %68 : vector<1x128xf32>
    %cst_25 = arith.constant -7.91847038 : f32
    %71 = vector.broadcast %cst_25 : f32 to vector<1x128xf32>
    %72 = arith.addf %70, %71 : vector<1x128xf32>
    %cst_26 = arith.constant 4.000000e+00 : f32
    %73 = vector.broadcast %cst_26 : f32 to vector<1x128xf32>
    %74 = arith.mulf %73, %56 : vector<1x128xf32>
    %75 = arith.addf %59, %74 : vector<1x128xf32>
    %cst_27 = arith.constant 1.280000e+02 : f32
    %76 = vector.broadcast %cst_27 : f32 to vector<1x128xf32>
    %77 = arith.addf %75, %76 : vector<1x128xf32>
    %cst_28 = arith.constant -2.000000e+00 : f32
    %78 = vector.broadcast %cst_28 : f32 to vector<1x128xf32>
    %79 = arith.mulf %78, %77 : vector<1x128xf32>
    %cst_29 = arith.constant -7.91847038 : f32
    %80 = vector.broadcast %cst_29 : f32 to vector<1x128xf32>
    %81 = arith.addf %79, %80 : vector<1x128xf32>
    %82 = arith.maximumf %72, %81 : vector<1x128xf32>
    %83 = arith.subf %72, %82 : vector<1x128xf32>
    %84 = math.exp %83 : vector<1x128xf32>
    %85 = arith.subf %81, %82 : vector<1x128xf32>
    %86 = math.exp %85 : vector<1x128xf32>
    %87 = arith.addf %84, %86 : vector<1x128xf32>
    %88 = math.log %87 : vector<1x128xf32>
    %89 = arith.addf %82, %88 : vector<1x128xf32>
    %90 = arith.subf %89, %63 : vector<1x128xf32>
    %cst_30 = arith.constant 6.250000e-02 : f32
    %91 = vector.broadcast %cst_30 : f32 to vector<1x128xf32>
    %92 = arith.mulf %91, %90 : vector<1x128xf32>
    %93 = arith.addf %40, %92 : vector<1x128xf32>
    %94 = arith.subf %84, %86 : vector<1x128xf32>
    %95 = arith.divf %94, %87 : vector<1x128xf32>
    %cst_31 = arith.constant -8.750000e-01 : f32
    %96 = vector.broadcast %cst_31 : f32 to vector<32x128xf32>
    %97 = arith.mulf %96, %54 : vector<32x128xf32>
    %cst_32 = arith.constant 2.000000e+00 : f32
    %98 = vector.broadcast %cst_32 : f32 to vector<1x128xf32>
    %99 = arith.mulf %98, %95 : vector<1x128xf32>
    %100 = vector.broadcast %99 : vector<1x128xf32> to vector<32x128xf32>
    %101 = arith.subf %54, %100 : vector<32x128xf32>
    %cst_33 = arith.constant 5.000000e-01 : f32
    %102 = vector.broadcast %cst_33 : f32 to vector<32x128xf32>
    %103 = arith.mulf %102, %101 : vector<32x128xf32>
    %104 = arith.subf %97, %103 : vector<32x128xf32>
    %cst_34 = arith.constant 5.000000e-02 : f32
    %105 = vector.broadcast %cst_34 : f32 to vector<32x128xf32>
    %106 = arith.mulf %105, %104 : vector<32x128xf32>
    %107 = arith.addf %54, %106 : vector<32x128xf32>
    %cst_35 = arith.constant dense<0.000000e+00> : vector<128xf32>
    %108 = vector.multi_reduction <add>, %107, %cst_35 [0] : vector<32x128xf32> to vector<128xf32>
    %109 = vector.shape_cast %108 : vector<128xf32> to vector<1x128xf32>
    %110 = arith.mulf %107, %107 : vector<32x128xf32>
    %cst_36 = arith.constant dense<0.000000e+00> : vector<128xf32>
    %111 = vector.multi_reduction <add>, %110, %cst_36 [0] : vector<32x128xf32> to vector<128xf32>
    %112 = vector.shape_cast %111 : vector<128xf32> to vector<1x128xf32>
    %cst_37 = arith.constant -5.000000e-01 : f32
    %113 = vector.broadcast %cst_37 : f32 to vector<1x128xf32>
    %114 = arith.mulf %113, %112 : vector<1x128xf32>
    %cst_38 = arith.constant -29.4060326 : f32
    %115 = vector.broadcast %cst_38 : f32 to vector<1x128xf32>
    %116 = arith.addf %114, %115 : vector<1x128xf32>
    %cst_39 = arith.constant 4.000000e+00 : f32
    %117 = vector.broadcast %cst_39 : f32 to vector<1x128xf32>
    %118 = arith.mulf %117, %109 : vector<1x128xf32>
    %119 = arith.subf %112, %118 : vector<1x128xf32>
    %cst_40 = arith.constant 1.280000e+02 : f32
    %120 = vector.broadcast %cst_40 : f32 to vector<1x128xf32>
    %121 = arith.addf %119, %120 : vector<1x128xf32>
    %cst_41 = arith.constant -2.000000e+00 : f32
    %122 = vector.broadcast %cst_41 : f32 to vector<1x128xf32>
    %123 = arith.mulf %122, %121 : vector<1x128xf32>
    %cst_42 = arith.constant -7.91847038 : f32
    %124 = vector.broadcast %cst_42 : f32 to vector<1x128xf32>
    %125 = arith.addf %123, %124 : vector<1x128xf32>
    %cst_43 = arith.constant 4.000000e+00 : f32
    %126 = vector.broadcast %cst_43 : f32 to vector<1x128xf32>
    %127 = arith.mulf %126, %109 : vector<1x128xf32>
    %128 = arith.addf %112, %127 : vector<1x128xf32>
    %cst_44 = arith.constant 1.280000e+02 : f32
    %129 = vector.broadcast %cst_44 : f32 to vector<1x128xf32>
    %130 = arith.addf %128, %129 : vector<1x128xf32>
    %cst_45 = arith.constant -2.000000e+00 : f32
    %131 = vector.broadcast %cst_45 : f32 to vector<1x128xf32>
    %132 = arith.mulf %131, %130 : vector<1x128xf32>
    %cst_46 = arith.constant -7.91847038 : f32
    %133 = vector.broadcast %cst_46 : f32 to vector<1x128xf32>
    %134 = arith.addf %132, %133 : vector<1x128xf32>
    %135 = arith.maximumf %125, %134 : vector<1x128xf32>
    %136 = arith.subf %125, %135 : vector<1x128xf32>
    %137 = math.exp %136 : vector<1x128xf32>
    %138 = arith.subf %134, %135 : vector<1x128xf32>
    %139 = math.exp %138 : vector<1x128xf32>
    %140 = arith.addf %137, %139 : vector<1x128xf32>
    %141 = math.log %140 : vector<1x128xf32>
    %142 = arith.addf %135, %141 : vector<1x128xf32>
    %143 = arith.subf %142, %116 : vector<1x128xf32>
    %cst_47 = arith.constant 6.250000e-02 : f32
    %144 = vector.broadcast %cst_47 : f32 to vector<1x128xf32>
    %145 = arith.mulf %144, %143 : vector<1x128xf32>
    %146 = arith.addf %93, %145 : vector<1x128xf32>
    %147 = arith.subf %137, %139 : vector<1x128xf32>
    %148 = arith.divf %147, %140 : vector<1x128xf32>
    %cst_48 = arith.constant -8.125000e-01 : f32
    %149 = vector.broadcast %cst_48 : f32 to vector<32x128xf32>
    %150 = arith.mulf %149, %107 : vector<32x128xf32>
    %cst_49 = arith.constant 2.000000e+00 : f32
    %151 = vector.broadcast %cst_49 : f32 to vector<1x128xf32>
    %152 = arith.mulf %151, %148 : vector<1x128xf32>
    %153 = vector.broadcast %152 : vector<1x128xf32> to vector<32x128xf32>
    %154 = arith.subf %107, %153 : vector<32x128xf32>
    %cst_50 = arith.constant 7.500000e-01 : f32
    %155 = vector.broadcast %cst_50 : f32 to vector<32x128xf32>
    %156 = arith.mulf %155, %154 : vector<32x128xf32>
    %157 = arith.subf %150, %156 : vector<32x128xf32>
    %cst_51 = arith.constant 5.000000e-02 : f32
    %158 = vector.broadcast %cst_51 : f32 to vector<32x128xf32>
    %159 = arith.mulf %158, %157 : vector<32x128xf32>
    %160 = arith.addf %107, %159 : vector<32x128xf32>
    %cst_52 = arith.constant dense<0.000000e+00> : vector<128xf32>
    %161 = vector.multi_reduction <add>, %160, %cst_52 [0] : vector<32x128xf32> to vector<128xf32>
    %162 = vector.shape_cast %161 : vector<128xf32> to vector<1x128xf32>
    %163 = arith.mulf %160, %160 : vector<32x128xf32>
    %cst_53 = arith.constant dense<0.000000e+00> : vector<128xf32>
    %164 = vector.multi_reduction <add>, %163, %cst_53 [0] : vector<32x128xf32> to vector<128xf32>
    %165 = vector.shape_cast %164 : vector<128xf32> to vector<1x128xf32>
    %cst_54 = arith.constant -5.000000e-01 : f32
    %166 = vector.broadcast %cst_54 : f32 to vector<1x128xf32>
    %167 = arith.mulf %166, %165 : vector<1x128xf32>
    %cst_55 = arith.constant -29.4060326 : f32
    %168 = vector.broadcast %cst_55 : f32 to vector<1x128xf32>
    %169 = arith.addf %167, %168 : vector<1x128xf32>
    %cst_56 = arith.constant 4.000000e+00 : f32
    %170 = vector.broadcast %cst_56 : f32 to vector<1x128xf32>
    %171 = arith.mulf %170, %162 : vector<1x128xf32>
    %172 = arith.subf %165, %171 : vector<1x128xf32>
    %cst_57 = arith.constant 1.280000e+02 : f32
    %173 = vector.broadcast %cst_57 : f32 to vector<1x128xf32>
    %174 = arith.addf %172, %173 : vector<1x128xf32>
    %cst_58 = arith.constant -2.000000e+00 : f32
    %175 = vector.broadcast %cst_58 : f32 to vector<1x128xf32>
    %176 = arith.mulf %175, %174 : vector<1x128xf32>
    %cst_59 = arith.constant -7.91847038 : f32
    %177 = vector.broadcast %cst_59 : f32 to vector<1x128xf32>
    %178 = arith.addf %176, %177 : vector<1x128xf32>
    %cst_60 = arith.constant 4.000000e+00 : f32
    %179 = vector.broadcast %cst_60 : f32 to vector<1x128xf32>
    %180 = arith.mulf %179, %162 : vector<1x128xf32>
    %181 = arith.addf %165, %180 : vector<1x128xf32>
    %cst_61 = arith.constant 1.280000e+02 : f32
    %182 = vector.broadcast %cst_61 : f32 to vector<1x128xf32>
    %183 = arith.addf %181, %182 : vector<1x128xf32>
    %cst_62 = arith.constant -2.000000e+00 : f32
    %184 = vector.broadcast %cst_62 : f32 to vector<1x128xf32>
    %185 = arith.mulf %184, %183 : vector<1x128xf32>
    %cst_63 = arith.constant -7.91847038 : f32
    %186 = vector.broadcast %cst_63 : f32 to vector<1x128xf32>
    %187 = arith.addf %185, %186 : vector<1x128xf32>
    %188 = arith.maximumf %178, %187 : vector<1x128xf32>
    %189 = arith.subf %178, %188 : vector<1x128xf32>
    %190 = math.exp %189 : vector<1x128xf32>
    %191 = arith.subf %187, %188 : vector<1x128xf32>
    %192 = math.exp %191 : vector<1x128xf32>
    %193 = arith.addf %190, %192 : vector<1x128xf32>
    %194 = math.log %193 : vector<1x128xf32>
    %195 = arith.addf %188, %194 : vector<1x128xf32>
    %196 = arith.subf %195, %169 : vector<1x128xf32>
    %cst_64 = arith.constant 6.250000e-02 : f32
    %197 = vector.broadcast %cst_64 : f32 to vector<1x128xf32>
    %198 = arith.mulf %197, %196 : vector<1x128xf32>
    %199 = arith.addf %146, %198 : vector<1x128xf32>
    %200 = arith.subf %190, %192 : vector<1x128xf32>
    %201 = arith.divf %200, %193 : vector<1x128xf32>
    %cst_65 = arith.constant -7.500000e-01 : f32
    %202 = vector.broadcast %cst_65 : f32 to vector<32x128xf32>
    %203 = arith.mulf %202, %160 : vector<32x128xf32>
    %cst_66 = arith.constant 2.000000e+00 : f32
    %204 = vector.broadcast %cst_66 : f32 to vector<1x128xf32>
    %205 = arith.mulf %204, %201 : vector<1x128xf32>
    %206 = vector.broadcast %205 : vector<1x128xf32> to vector<32x128xf32>
    %207 = arith.subf %160, %206 : vector<32x128xf32>
    %cst_67 = arith.constant 1.000000e+00 : f32
    %208 = vector.broadcast %cst_67 : f32 to vector<32x128xf32>
    %209 = arith.mulf %208, %207 : vector<32x128xf32>
    %210 = arith.subf %203, %209 : vector<32x128xf32>
    %cst_68 = arith.constant 5.000000e-02 : f32
    %211 = vector.broadcast %cst_68 : f32 to vector<32x128xf32>
    %212 = arith.mulf %211, %210 : vector<32x128xf32>
    %213 = arith.addf %160, %212 : vector<32x128xf32>
    %cst_69 = arith.constant dense<0.000000e+00> : vector<128xf32>
    %214 = vector.multi_reduction <add>, %213, %cst_69 [0] : vector<32x128xf32> to vector<128xf32>
    %215 = vector.shape_cast %214 : vector<128xf32> to vector<1x128xf32>
    %216 = arith.mulf %213, %213 : vector<32x128xf32>
    %cst_70 = arith.constant dense<0.000000e+00> : vector<128xf32>
    %217 = vector.multi_reduction <add>, %216, %cst_70 [0] : vector<32x128xf32> to vector<128xf32>
    %218 = vector.shape_cast %217 : vector<128xf32> to vector<1x128xf32>
    %cst_71 = arith.constant -5.000000e-01 : f32
    %219 = vector.broadcast %cst_71 : f32 to vector<1x128xf32>
    %220 = arith.mulf %219, %218 : vector<1x128xf32>
    %cst_72 = arith.constant -29.4060326 : f32
    %221 = vector.broadcast %cst_72 : f32 to vector<1x128xf32>
    %222 = arith.addf %220, %221 : vector<1x128xf32>
    %cst_73 = arith.constant 4.000000e+00 : f32
    %223 = vector.broadcast %cst_73 : f32 to vector<1x128xf32>
    %224 = arith.mulf %223, %215 : vector<1x128xf32>
    %225 = arith.subf %218, %224 : vector<1x128xf32>
    %cst_74 = arith.constant 1.280000e+02 : f32
    %226 = vector.broadcast %cst_74 : f32 to vector<1x128xf32>
    %227 = arith.addf %225, %226 : vector<1x128xf32>
    %cst_75 = arith.constant -2.000000e+00 : f32
    %228 = vector.broadcast %cst_75 : f32 to vector<1x128xf32>
    %229 = arith.mulf %228, %227 : vector<1x128xf32>
    %cst_76 = arith.constant -7.91847038 : f32
    %230 = vector.broadcast %cst_76 : f32 to vector<1x128xf32>
    %231 = arith.addf %229, %230 : vector<1x128xf32>
    %cst_77 = arith.constant 4.000000e+00 : f32
    %232 = vector.broadcast %cst_77 : f32 to vector<1x128xf32>
    %233 = arith.mulf %232, %215 : vector<1x128xf32>
    %234 = arith.addf %218, %233 : vector<1x128xf32>
    %cst_78 = arith.constant 1.280000e+02 : f32
    %235 = vector.broadcast %cst_78 : f32 to vector<1x128xf32>
    %236 = arith.addf %234, %235 : vector<1x128xf32>
    %cst_79 = arith.constant -2.000000e+00 : f32
    %237 = vector.broadcast %cst_79 : f32 to vector<1x128xf32>
    %238 = arith.mulf %237, %236 : vector<1x128xf32>
    %cst_80 = arith.constant -7.91847038 : f32
    %239 = vector.broadcast %cst_80 : f32 to vector<1x128xf32>
    %240 = arith.addf %238, %239 : vector<1x128xf32>
    %241 = arith.maximumf %231, %240 : vector<1x128xf32>
    %242 = arith.subf %231, %241 : vector<1x128xf32>
    %243 = math.exp %242 : vector<1x128xf32>
    %244 = arith.subf %240, %241 : vector<1x128xf32>
    %245 = math.exp %244 : vector<1x128xf32>
    %246 = arith.addf %243, %245 : vector<1x128xf32>
    %247 = math.log %246 : vector<1x128xf32>
    %248 = arith.addf %241, %247 : vector<1x128xf32>
    %249 = arith.subf %248, %222 : vector<1x128xf32>
    %cst_81 = arith.constant 6.250000e-02 : f32
    %250 = vector.broadcast %cst_81 : f32 to vector<1x128xf32>
    %251 = arith.mulf %250, %249 : vector<1x128xf32>
    %252 = arith.addf %199, %251 : vector<1x128xf32>
    %253 = arith.subf %243, %245 : vector<1x128xf32>
    %254 = arith.divf %253, %246 : vector<1x128xf32>
    %cst_82 = arith.constant -6.875000e-01 : f32
    %255 = vector.broadcast %cst_82 : f32 to vector<32x128xf32>
    %256 = arith.mulf %255, %213 : vector<32x128xf32>
    %cst_83 = arith.constant 2.000000e+00 : f32
    %257 = vector.broadcast %cst_83 : f32 to vector<1x128xf32>
    %258 = arith.mulf %257, %254 : vector<1x128xf32>
    %259 = vector.broadcast %258 : vector<1x128xf32> to vector<32x128xf32>
    %260 = arith.subf %213, %259 : vector<32x128xf32>
    %cst_84 = arith.constant 1.250000e+00 : f32
    %261 = vector.broadcast %cst_84 : f32 to vector<32x128xf32>
    %262 = arith.mulf %261, %260 : vector<32x128xf32>
    %263 = arith.subf %256, %262 : vector<32x128xf32>
    %cst_85 = arith.constant 5.000000e-02 : f32
    %264 = vector.broadcast %cst_85 : f32 to vector<32x128xf32>
    %265 = arith.mulf %264, %263 : vector<32x128xf32>
    %266 = arith.addf %213, %265 : vector<32x128xf32>
    %cst_86 = arith.constant dense<0.000000e+00> : vector<128xf32>
    %267 = vector.multi_reduction <add>, %266, %cst_86 [0] : vector<32x128xf32> to vector<128xf32>
    %268 = vector.shape_cast %267 : vector<128xf32> to vector<1x128xf32>
    %269 = arith.mulf %266, %266 : vector<32x128xf32>
    %cst_87 = arith.constant dense<0.000000e+00> : vector<128xf32>
    %270 = vector.multi_reduction <add>, %269, %cst_87 [0] : vector<32x128xf32> to vector<128xf32>
    %271 = vector.shape_cast %270 : vector<128xf32> to vector<1x128xf32>
    %cst_88 = arith.constant -5.000000e-01 : f32
    %272 = vector.broadcast %cst_88 : f32 to vector<1x128xf32>
    %273 = arith.mulf %272, %271 : vector<1x128xf32>
    %cst_89 = arith.constant -29.4060326 : f32
    %274 = vector.broadcast %cst_89 : f32 to vector<1x128xf32>
    %275 = arith.addf %273, %274 : vector<1x128xf32>
    %cst_90 = arith.constant 4.000000e+00 : f32
    %276 = vector.broadcast %cst_90 : f32 to vector<1x128xf32>
    %277 = arith.mulf %276, %268 : vector<1x128xf32>
    %278 = arith.subf %271, %277 : vector<1x128xf32>
    %cst_91 = arith.constant 1.280000e+02 : f32
    %279 = vector.broadcast %cst_91 : f32 to vector<1x128xf32>
    %280 = arith.addf %278, %279 : vector<1x128xf32>
    %cst_92 = arith.constant -2.000000e+00 : f32
    %281 = vector.broadcast %cst_92 : f32 to vector<1x128xf32>
    %282 = arith.mulf %281, %280 : vector<1x128xf32>
    %cst_93 = arith.constant -7.91847038 : f32
    %283 = vector.broadcast %cst_93 : f32 to vector<1x128xf32>
    %284 = arith.addf %282, %283 : vector<1x128xf32>
    %cst_94 = arith.constant 4.000000e+00 : f32
    %285 = vector.broadcast %cst_94 : f32 to vector<1x128xf32>
    %286 = arith.mulf %285, %268 : vector<1x128xf32>
    %287 = arith.addf %271, %286 : vector<1x128xf32>
    %cst_95 = arith.constant 1.280000e+02 : f32
    %288 = vector.broadcast %cst_95 : f32 to vector<1x128xf32>
    %289 = arith.addf %287, %288 : vector<1x128xf32>
    %cst_96 = arith.constant -2.000000e+00 : f32
    %290 = vector.broadcast %cst_96 : f32 to vector<1x128xf32>
    %291 = arith.mulf %290, %289 : vector<1x128xf32>
    %cst_97 = arith.constant -7.91847038 : f32
    %292 = vector.broadcast %cst_97 : f32 to vector<1x128xf32>
    %293 = arith.addf %291, %292 : vector<1x128xf32>
    %294 = arith.maximumf %284, %293 : vector<1x128xf32>
    %295 = arith.subf %284, %294 : vector<1x128xf32>
    %296 = math.exp %295 : vector<1x128xf32>
    %297 = arith.subf %293, %294 : vector<1x128xf32>
    %298 = math.exp %297 : vector<1x128xf32>
    %299 = arith.addf %296, %298 : vector<1x128xf32>
    %300 = math.log %299 : vector<1x128xf32>
    %301 = arith.addf %294, %300 : vector<1x128xf32>
    %302 = arith.subf %301, %275 : vector<1x128xf32>
    %cst_98 = arith.constant 6.250000e-02 : f32
    %303 = vector.broadcast %cst_98 : f32 to vector<1x128xf32>
    %304 = arith.mulf %303, %302 : vector<1x128xf32>
    %305 = arith.addf %252, %304 : vector<1x128xf32>
    %306 = arith.subf %296, %298 : vector<1x128xf32>
    %307 = arith.divf %306, %299 : vector<1x128xf32>
    %cst_99 = arith.constant -6.250000e-01 : f32
    %308 = vector.broadcast %cst_99 : f32 to vector<32x128xf32>
    %309 = arith.mulf %308, %266 : vector<32x128xf32>
    %cst_100 = arith.constant 2.000000e+00 : f32
    %310 = vector.broadcast %cst_100 : f32 to vector<1x128xf32>
    %311 = arith.mulf %310, %307 : vector<1x128xf32>
    %312 = vector.broadcast %311 : vector<1x128xf32> to vector<32x128xf32>
    %313 = arith.subf %266, %312 : vector<32x128xf32>
    %cst_101 = arith.constant 1.500000e+00 : f32
    %314 = vector.broadcast %cst_101 : f32 to vector<32x128xf32>
    %315 = arith.mulf %314, %313 : vector<32x128xf32>
    %316 = arith.subf %309, %315 : vector<32x128xf32>
    %cst_102 = arith.constant 5.000000e-02 : f32
    %317 = vector.broadcast %cst_102 : f32 to vector<32x128xf32>
    %318 = arith.mulf %317, %316 : vector<32x128xf32>
    %319 = arith.addf %266, %318 : vector<32x128xf32>
    %cst_103 = arith.constant dense<0.000000e+00> : vector<128xf32>
    %320 = vector.multi_reduction <add>, %319, %cst_103 [0] : vector<32x128xf32> to vector<128xf32>
    %321 = vector.shape_cast %320 : vector<128xf32> to vector<1x128xf32>
    %322 = arith.mulf %319, %319 : vector<32x128xf32>
    %cst_104 = arith.constant dense<0.000000e+00> : vector<128xf32>
    %323 = vector.multi_reduction <add>, %322, %cst_104 [0] : vector<32x128xf32> to vector<128xf32>
    %324 = vector.shape_cast %323 : vector<128xf32> to vector<1x128xf32>
    %cst_105 = arith.constant -5.000000e-01 : f32
    %325 = vector.broadcast %cst_105 : f32 to vector<1x128xf32>
    %326 = arith.mulf %325, %324 : vector<1x128xf32>
    %cst_106 = arith.constant -29.4060326 : f32
    %327 = vector.broadcast %cst_106 : f32 to vector<1x128xf32>
    %328 = arith.addf %326, %327 : vector<1x128xf32>
    %cst_107 = arith.constant 4.000000e+00 : f32
    %329 = vector.broadcast %cst_107 : f32 to vector<1x128xf32>
    %330 = arith.mulf %329, %321 : vector<1x128xf32>
    %331 = arith.subf %324, %330 : vector<1x128xf32>
    %cst_108 = arith.constant 1.280000e+02 : f32
    %332 = vector.broadcast %cst_108 : f32 to vector<1x128xf32>
    %333 = arith.addf %331, %332 : vector<1x128xf32>
    %cst_109 = arith.constant -2.000000e+00 : f32
    %334 = vector.broadcast %cst_109 : f32 to vector<1x128xf32>
    %335 = arith.mulf %334, %333 : vector<1x128xf32>
    %cst_110 = arith.constant -7.91847038 : f32
    %336 = vector.broadcast %cst_110 : f32 to vector<1x128xf32>
    %337 = arith.addf %335, %336 : vector<1x128xf32>
    %cst_111 = arith.constant 4.000000e+00 : f32
    %338 = vector.broadcast %cst_111 : f32 to vector<1x128xf32>
    %339 = arith.mulf %338, %321 : vector<1x128xf32>
    %340 = arith.addf %324, %339 : vector<1x128xf32>
    %cst_112 = arith.constant 1.280000e+02 : f32
    %341 = vector.broadcast %cst_112 : f32 to vector<1x128xf32>
    %342 = arith.addf %340, %341 : vector<1x128xf32>
    %cst_113 = arith.constant -2.000000e+00 : f32
    %343 = vector.broadcast %cst_113 : f32 to vector<1x128xf32>
    %344 = arith.mulf %343, %342 : vector<1x128xf32>
    %cst_114 = arith.constant -7.91847038 : f32
    %345 = vector.broadcast %cst_114 : f32 to vector<1x128xf32>
    %346 = arith.addf %344, %345 : vector<1x128xf32>
    %347 = arith.maximumf %337, %346 : vector<1x128xf32>
    %348 = arith.subf %337, %347 : vector<1x128xf32>
    %349 = math.exp %348 : vector<1x128xf32>
    %350 = arith.subf %346, %347 : vector<1x128xf32>
    %351 = math.exp %350 : vector<1x128xf32>
    %352 = arith.addf %349, %351 : vector<1x128xf32>
    %353 = math.log %352 : vector<1x128xf32>
    %354 = arith.addf %347, %353 : vector<1x128xf32>
    %355 = arith.subf %354, %328 : vector<1x128xf32>
    %cst_115 = arith.constant 6.250000e-02 : f32
    %356 = vector.broadcast %cst_115 : f32 to vector<1x128xf32>
    %357 = arith.mulf %356, %355 : vector<1x128xf32>
    %358 = arith.addf %305, %357 : vector<1x128xf32>
    %359 = arith.subf %349, %351 : vector<1x128xf32>
    %360 = arith.divf %359, %352 : vector<1x128xf32>
    %cst_116 = arith.constant -5.625000e-01 : f32
    %361 = vector.broadcast %cst_116 : f32 to vector<32x128xf32>
    %362 = arith.mulf %361, %319 : vector<32x128xf32>
    %cst_117 = arith.constant 2.000000e+00 : f32
    %363 = vector.broadcast %cst_117 : f32 to vector<1x128xf32>
    %364 = arith.mulf %363, %360 : vector<1x128xf32>
    %365 = vector.broadcast %364 : vector<1x128xf32> to vector<32x128xf32>
    %366 = arith.subf %319, %365 : vector<32x128xf32>
    %cst_118 = arith.constant 1.750000e+00 : f32
    %367 = vector.broadcast %cst_118 : f32 to vector<32x128xf32>
    %368 = arith.mulf %367, %366 : vector<32x128xf32>
    %369 = arith.subf %362, %368 : vector<32x128xf32>
    %cst_119 = arith.constant 5.000000e-02 : f32
    %370 = vector.broadcast %cst_119 : f32 to vector<32x128xf32>
    %371 = arith.mulf %370, %369 : vector<32x128xf32>
    %372 = arith.addf %319, %371 : vector<32x128xf32>
    %cst_120 = arith.constant dense<0.000000e+00> : vector<128xf32>
    %373 = vector.multi_reduction <add>, %372, %cst_120 [0] : vector<32x128xf32> to vector<128xf32>
    %374 = vector.shape_cast %373 : vector<128xf32> to vector<1x128xf32>
    %375 = arith.mulf %372, %372 : vector<32x128xf32>
    %cst_121 = arith.constant dense<0.000000e+00> : vector<128xf32>
    %376 = vector.multi_reduction <add>, %375, %cst_121 [0] : vector<32x128xf32> to vector<128xf32>
    %377 = vector.shape_cast %376 : vector<128xf32> to vector<1x128xf32>
    %cst_122 = arith.constant -5.000000e-01 : f32
    %378 = vector.broadcast %cst_122 : f32 to vector<1x128xf32>
    %379 = arith.mulf %378, %377 : vector<1x128xf32>
    %cst_123 = arith.constant -29.4060326 : f32
    %380 = vector.broadcast %cst_123 : f32 to vector<1x128xf32>
    %381 = arith.addf %379, %380 : vector<1x128xf32>
    %cst_124 = arith.constant 4.000000e+00 : f32
    %382 = vector.broadcast %cst_124 : f32 to vector<1x128xf32>
    %383 = arith.mulf %382, %374 : vector<1x128xf32>
    %384 = arith.subf %377, %383 : vector<1x128xf32>
    %cst_125 = arith.constant 1.280000e+02 : f32
    %385 = vector.broadcast %cst_125 : f32 to vector<1x128xf32>
    %386 = arith.addf %384, %385 : vector<1x128xf32>
    %cst_126 = arith.constant -2.000000e+00 : f32
    %387 = vector.broadcast %cst_126 : f32 to vector<1x128xf32>
    %388 = arith.mulf %387, %386 : vector<1x128xf32>
    %cst_127 = arith.constant -7.91847038 : f32
    %389 = vector.broadcast %cst_127 : f32 to vector<1x128xf32>
    %390 = arith.addf %388, %389 : vector<1x128xf32>
    %cst_128 = arith.constant 4.000000e+00 : f32
    %391 = vector.broadcast %cst_128 : f32 to vector<1x128xf32>
    %392 = arith.mulf %391, %374 : vector<1x128xf32>
    %393 = arith.addf %377, %392 : vector<1x128xf32>
    %cst_129 = arith.constant 1.280000e+02 : f32
    %394 = vector.broadcast %cst_129 : f32 to vector<1x128xf32>
    %395 = arith.addf %393, %394 : vector<1x128xf32>
    %cst_130 = arith.constant -2.000000e+00 : f32
    %396 = vector.broadcast %cst_130 : f32 to vector<1x128xf32>
    %397 = arith.mulf %396, %395 : vector<1x128xf32>
    %cst_131 = arith.constant -7.91847038 : f32
    %398 = vector.broadcast %cst_131 : f32 to vector<1x128xf32>
    %399 = arith.addf %397, %398 : vector<1x128xf32>
    %400 = arith.maximumf %390, %399 : vector<1x128xf32>
    %401 = arith.subf %390, %400 : vector<1x128xf32>
    %402 = math.exp %401 : vector<1x128xf32>
    %403 = arith.subf %399, %400 : vector<1x128xf32>
    %404 = math.exp %403 : vector<1x128xf32>
    %405 = arith.addf %402, %404 : vector<1x128xf32>
    %406 = math.log %405 : vector<1x128xf32>
    %407 = arith.addf %400, %406 : vector<1x128xf32>
    %408 = arith.subf %407, %381 : vector<1x128xf32>
    %cst_132 = arith.constant 6.250000e-02 : f32
    %409 = vector.broadcast %cst_132 : f32 to vector<1x128xf32>
    %410 = arith.mulf %409, %408 : vector<1x128xf32>
    %411 = arith.addf %358, %410 : vector<1x128xf32>
    %412 = arith.subf %402, %404 : vector<1x128xf32>
    %413 = arith.divf %412, %405 : vector<1x128xf32>
    %cst_133 = arith.constant -5.000000e-01 : f32
    %414 = vector.broadcast %cst_133 : f32 to vector<32x128xf32>
    %415 = arith.mulf %414, %372 : vector<32x128xf32>
    %cst_134 = arith.constant 2.000000e+00 : f32
    %416 = vector.broadcast %cst_134 : f32 to vector<1x128xf32>
    %417 = arith.mulf %416, %413 : vector<1x128xf32>
    %418 = vector.broadcast %417 : vector<1x128xf32> to vector<32x128xf32>
    %419 = arith.subf %372, %418 : vector<32x128xf32>
    %cst_135 = arith.constant 2.000000e+00 : f32
    %420 = vector.broadcast %cst_135 : f32 to vector<32x128xf32>
    %421 = arith.mulf %420, %419 : vector<32x128xf32>
    %422 = arith.subf %415, %421 : vector<32x128xf32>
    %cst_136 = arith.constant 5.000000e-02 : f32
    %423 = vector.broadcast %cst_136 : f32 to vector<32x128xf32>
    %424 = arith.mulf %423, %422 : vector<32x128xf32>
    %425 = arith.addf %372, %424 : vector<32x128xf32>
    %cst_137 = arith.constant dense<0.000000e+00> : vector<128xf32>
    %426 = vector.multi_reduction <add>, %425, %cst_137 [0] : vector<32x128xf32> to vector<128xf32>
    %427 = vector.shape_cast %426 : vector<128xf32> to vector<1x128xf32>
    %428 = arith.mulf %425, %425 : vector<32x128xf32>
    %cst_138 = arith.constant dense<0.000000e+00> : vector<128xf32>
    %429 = vector.multi_reduction <add>, %428, %cst_138 [0] : vector<32x128xf32> to vector<128xf32>
    %430 = vector.shape_cast %429 : vector<128xf32> to vector<1x128xf32>
    %cst_139 = arith.constant -5.000000e-01 : f32
    %431 = vector.broadcast %cst_139 : f32 to vector<1x128xf32>
    %432 = arith.mulf %431, %430 : vector<1x128xf32>
    %cst_140 = arith.constant -29.4060326 : f32
    %433 = vector.broadcast %cst_140 : f32 to vector<1x128xf32>
    %434 = arith.addf %432, %433 : vector<1x128xf32>
    %cst_141 = arith.constant 4.000000e+00 : f32
    %435 = vector.broadcast %cst_141 : f32 to vector<1x128xf32>
    %436 = arith.mulf %435, %427 : vector<1x128xf32>
    %437 = arith.subf %430, %436 : vector<1x128xf32>
    %cst_142 = arith.constant 1.280000e+02 : f32
    %438 = vector.broadcast %cst_142 : f32 to vector<1x128xf32>
    %439 = arith.addf %437, %438 : vector<1x128xf32>
    %cst_143 = arith.constant -2.000000e+00 : f32
    %440 = vector.broadcast %cst_143 : f32 to vector<1x128xf32>
    %441 = arith.mulf %440, %439 : vector<1x128xf32>
    %cst_144 = arith.constant -7.91847038 : f32
    %442 = vector.broadcast %cst_144 : f32 to vector<1x128xf32>
    %443 = arith.addf %441, %442 : vector<1x128xf32>
    %cst_145 = arith.constant 4.000000e+00 : f32
    %444 = vector.broadcast %cst_145 : f32 to vector<1x128xf32>
    %445 = arith.mulf %444, %427 : vector<1x128xf32>
    %446 = arith.addf %430, %445 : vector<1x128xf32>
    %cst_146 = arith.constant 1.280000e+02 : f32
    %447 = vector.broadcast %cst_146 : f32 to vector<1x128xf32>
    %448 = arith.addf %446, %447 : vector<1x128xf32>
    %cst_147 = arith.constant -2.000000e+00 : f32
    %449 = vector.broadcast %cst_147 : f32 to vector<1x128xf32>
    %450 = arith.mulf %449, %448 : vector<1x128xf32>
    %cst_148 = arith.constant -7.91847038 : f32
    %451 = vector.broadcast %cst_148 : f32 to vector<1x128xf32>
    %452 = arith.addf %450, %451 : vector<1x128xf32>
    %453 = arith.maximumf %443, %452 : vector<1x128xf32>
    %454 = arith.subf %443, %453 : vector<1x128xf32>
    %455 = math.exp %454 : vector<1x128xf32>
    %456 = arith.subf %452, %453 : vector<1x128xf32>
    %457 = math.exp %456 : vector<1x128xf32>
    %458 = arith.addf %455, %457 : vector<1x128xf32>
    %459 = math.log %458 : vector<1x128xf32>
    %460 = arith.addf %453, %459 : vector<1x128xf32>
    %461 = arith.subf %460, %434 : vector<1x128xf32>
    %cst_149 = arith.constant 6.250000e-02 : f32
    %462 = vector.broadcast %cst_149 : f32 to vector<1x128xf32>
    %463 = arith.mulf %462, %461 : vector<1x128xf32>
    %464 = arith.addf %411, %463 : vector<1x128xf32>
    %465 = arith.subf %455, %457 : vector<1x128xf32>
    %466 = arith.divf %465, %458 : vector<1x128xf32>
    %cst_150 = arith.constant -4.375000e-01 : f32
    %467 = vector.broadcast %cst_150 : f32 to vector<32x128xf32>
    %468 = arith.mulf %467, %425 : vector<32x128xf32>
    %cst_151 = arith.constant 2.000000e+00 : f32
    %469 = vector.broadcast %cst_151 : f32 to vector<1x128xf32>
    %470 = arith.mulf %469, %466 : vector<1x128xf32>
    %471 = vector.broadcast %470 : vector<1x128xf32> to vector<32x128xf32>
    %472 = arith.subf %425, %471 : vector<32x128xf32>
    %cst_152 = arith.constant 2.250000e+00 : f32
    %473 = vector.broadcast %cst_152 : f32 to vector<32x128xf32>
    %474 = arith.mulf %473, %472 : vector<32x128xf32>
    %475 = arith.subf %468, %474 : vector<32x128xf32>
    %cst_153 = arith.constant 5.000000e-02 : f32
    %476 = vector.broadcast %cst_153 : f32 to vector<32x128xf32>
    %477 = arith.mulf %476, %475 : vector<32x128xf32>
    %478 = arith.addf %425, %477 : vector<32x128xf32>
    %cst_154 = arith.constant dense<0.000000e+00> : vector<128xf32>
    %479 = vector.multi_reduction <add>, %478, %cst_154 [0] : vector<32x128xf32> to vector<128xf32>
    %480 = vector.shape_cast %479 : vector<128xf32> to vector<1x128xf32>
    %481 = arith.mulf %478, %478 : vector<32x128xf32>
    %cst_155 = arith.constant dense<0.000000e+00> : vector<128xf32>
    %482 = vector.multi_reduction <add>, %481, %cst_155 [0] : vector<32x128xf32> to vector<128xf32>
    %483 = vector.shape_cast %482 : vector<128xf32> to vector<1x128xf32>
    %cst_156 = arith.constant -5.000000e-01 : f32
    %484 = vector.broadcast %cst_156 : f32 to vector<1x128xf32>
    %485 = arith.mulf %484, %483 : vector<1x128xf32>
    %cst_157 = arith.constant -29.4060326 : f32
    %486 = vector.broadcast %cst_157 : f32 to vector<1x128xf32>
    %487 = arith.addf %485, %486 : vector<1x128xf32>
    %cst_158 = arith.constant 4.000000e+00 : f32
    %488 = vector.broadcast %cst_158 : f32 to vector<1x128xf32>
    %489 = arith.mulf %488, %480 : vector<1x128xf32>
    %490 = arith.subf %483, %489 : vector<1x128xf32>
    %cst_159 = arith.constant 1.280000e+02 : f32
    %491 = vector.broadcast %cst_159 : f32 to vector<1x128xf32>
    %492 = arith.addf %490, %491 : vector<1x128xf32>
    %cst_160 = arith.constant -2.000000e+00 : f32
    %493 = vector.broadcast %cst_160 : f32 to vector<1x128xf32>
    %494 = arith.mulf %493, %492 : vector<1x128xf32>
    %cst_161 = arith.constant -7.91847038 : f32
    %495 = vector.broadcast %cst_161 : f32 to vector<1x128xf32>
    %496 = arith.addf %494, %495 : vector<1x128xf32>
    %cst_162 = arith.constant 4.000000e+00 : f32
    %497 = vector.broadcast %cst_162 : f32 to vector<1x128xf32>
    %498 = arith.mulf %497, %480 : vector<1x128xf32>
    %499 = arith.addf %483, %498 : vector<1x128xf32>
    %cst_163 = arith.constant 1.280000e+02 : f32
    %500 = vector.broadcast %cst_163 : f32 to vector<1x128xf32>
    %501 = arith.addf %499, %500 : vector<1x128xf32>
    %cst_164 = arith.constant -2.000000e+00 : f32
    %502 = vector.broadcast %cst_164 : f32 to vector<1x128xf32>
    %503 = arith.mulf %502, %501 : vector<1x128xf32>
    %cst_165 = arith.constant -7.91847038 : f32
    %504 = vector.broadcast %cst_165 : f32 to vector<1x128xf32>
    %505 = arith.addf %503, %504 : vector<1x128xf32>
    %506 = arith.maximumf %496, %505 : vector<1x128xf32>
    %507 = arith.subf %496, %506 : vector<1x128xf32>
    %508 = math.exp %507 : vector<1x128xf32>
    %509 = arith.subf %505, %506 : vector<1x128xf32>
    %510 = math.exp %509 : vector<1x128xf32>
    %511 = arith.addf %508, %510 : vector<1x128xf32>
    %512 = math.log %511 : vector<1x128xf32>
    %513 = arith.addf %506, %512 : vector<1x128xf32>
    %514 = arith.subf %513, %487 : vector<1x128xf32>
    %cst_166 = arith.constant 6.250000e-02 : f32
    %515 = vector.broadcast %cst_166 : f32 to vector<1x128xf32>
    %516 = arith.mulf %515, %514 : vector<1x128xf32>
    %517 = arith.addf %464, %516 : vector<1x128xf32>
    %518 = arith.subf %508, %510 : vector<1x128xf32>
    %519 = arith.divf %518, %511 : vector<1x128xf32>
    %cst_167 = arith.constant -3.750000e-01 : f32
    %520 = vector.broadcast %cst_167 : f32 to vector<32x128xf32>
    %521 = arith.mulf %520, %478 : vector<32x128xf32>
    %cst_168 = arith.constant 2.000000e+00 : f32
    %522 = vector.broadcast %cst_168 : f32 to vector<1x128xf32>
    %523 = arith.mulf %522, %519 : vector<1x128xf32>
    %524 = vector.broadcast %523 : vector<1x128xf32> to vector<32x128xf32>
    %525 = arith.subf %478, %524 : vector<32x128xf32>
    %cst_169 = arith.constant 2.500000e+00 : f32
    %526 = vector.broadcast %cst_169 : f32 to vector<32x128xf32>
    %527 = arith.mulf %526, %525 : vector<32x128xf32>
    %528 = arith.subf %521, %527 : vector<32x128xf32>
    %cst_170 = arith.constant 5.000000e-02 : f32
    %529 = vector.broadcast %cst_170 : f32 to vector<32x128xf32>
    %530 = arith.mulf %529, %528 : vector<32x128xf32>
    %531 = arith.addf %478, %530 : vector<32x128xf32>
    %cst_171 = arith.constant dense<0.000000e+00> : vector<128xf32>
    %532 = vector.multi_reduction <add>, %531, %cst_171 [0] : vector<32x128xf32> to vector<128xf32>
    %533 = vector.shape_cast %532 : vector<128xf32> to vector<1x128xf32>
    %534 = arith.mulf %531, %531 : vector<32x128xf32>
    %cst_172 = arith.constant dense<0.000000e+00> : vector<128xf32>
    %535 = vector.multi_reduction <add>, %534, %cst_172 [0] : vector<32x128xf32> to vector<128xf32>
    %536 = vector.shape_cast %535 : vector<128xf32> to vector<1x128xf32>
    %cst_173 = arith.constant -5.000000e-01 : f32
    %537 = vector.broadcast %cst_173 : f32 to vector<1x128xf32>
    %538 = arith.mulf %537, %536 : vector<1x128xf32>
    %cst_174 = arith.constant -29.4060326 : f32
    %539 = vector.broadcast %cst_174 : f32 to vector<1x128xf32>
    %540 = arith.addf %538, %539 : vector<1x128xf32>
    %cst_175 = arith.constant 4.000000e+00 : f32
    %541 = vector.broadcast %cst_175 : f32 to vector<1x128xf32>
    %542 = arith.mulf %541, %533 : vector<1x128xf32>
    %543 = arith.subf %536, %542 : vector<1x128xf32>
    %cst_176 = arith.constant 1.280000e+02 : f32
    %544 = vector.broadcast %cst_176 : f32 to vector<1x128xf32>
    %545 = arith.addf %543, %544 : vector<1x128xf32>
    %cst_177 = arith.constant -2.000000e+00 : f32
    %546 = vector.broadcast %cst_177 : f32 to vector<1x128xf32>
    %547 = arith.mulf %546, %545 : vector<1x128xf32>
    %cst_178 = arith.constant -7.91847038 : f32
    %548 = vector.broadcast %cst_178 : f32 to vector<1x128xf32>
    %549 = arith.addf %547, %548 : vector<1x128xf32>
    %cst_179 = arith.constant 4.000000e+00 : f32
    %550 = vector.broadcast %cst_179 : f32 to vector<1x128xf32>
    %551 = arith.mulf %550, %533 : vector<1x128xf32>
    %552 = arith.addf %536, %551 : vector<1x128xf32>
    %cst_180 = arith.constant 1.280000e+02 : f32
    %553 = vector.broadcast %cst_180 : f32 to vector<1x128xf32>
    %554 = arith.addf %552, %553 : vector<1x128xf32>
    %cst_181 = arith.constant -2.000000e+00 : f32
    %555 = vector.broadcast %cst_181 : f32 to vector<1x128xf32>
    %556 = arith.mulf %555, %554 : vector<1x128xf32>
    %cst_182 = arith.constant -7.91847038 : f32
    %557 = vector.broadcast %cst_182 : f32 to vector<1x128xf32>
    %558 = arith.addf %556, %557 : vector<1x128xf32>
    %559 = arith.maximumf %549, %558 : vector<1x128xf32>
    %560 = arith.subf %549, %559 : vector<1x128xf32>
    %561 = math.exp %560 : vector<1x128xf32>
    %562 = arith.subf %558, %559 : vector<1x128xf32>
    %563 = math.exp %562 : vector<1x128xf32>
    %564 = arith.addf %561, %563 : vector<1x128xf32>
    %565 = math.log %564 : vector<1x128xf32>
    %566 = arith.addf %559, %565 : vector<1x128xf32>
    %567 = arith.subf %566, %540 : vector<1x128xf32>
    %cst_183 = arith.constant 6.250000e-02 : f32
    %568 = vector.broadcast %cst_183 : f32 to vector<1x128xf32>
    %569 = arith.mulf %568, %567 : vector<1x128xf32>
    %570 = arith.addf %517, %569 : vector<1x128xf32>
    %571 = arith.subf %561, %563 : vector<1x128xf32>
    %572 = arith.divf %571, %564 : vector<1x128xf32>
    %cst_184 = arith.constant -3.125000e-01 : f32
    %573 = vector.broadcast %cst_184 : f32 to vector<32x128xf32>
    %574 = arith.mulf %573, %531 : vector<32x128xf32>
    %cst_185 = arith.constant 2.000000e+00 : f32
    %575 = vector.broadcast %cst_185 : f32 to vector<1x128xf32>
    %576 = arith.mulf %575, %572 : vector<1x128xf32>
    %577 = vector.broadcast %576 : vector<1x128xf32> to vector<32x128xf32>
    %578 = arith.subf %531, %577 : vector<32x128xf32>
    %cst_186 = arith.constant 2.750000e+00 : f32
    %579 = vector.broadcast %cst_186 : f32 to vector<32x128xf32>
    %580 = arith.mulf %579, %578 : vector<32x128xf32>
    %581 = arith.subf %574, %580 : vector<32x128xf32>
    %cst_187 = arith.constant 5.000000e-02 : f32
    %582 = vector.broadcast %cst_187 : f32 to vector<32x128xf32>
    %583 = arith.mulf %582, %581 : vector<32x128xf32>
    %584 = arith.addf %531, %583 : vector<32x128xf32>
    %cst_188 = arith.constant dense<0.000000e+00> : vector<128xf32>
    %585 = vector.multi_reduction <add>, %584, %cst_188 [0] : vector<32x128xf32> to vector<128xf32>
    %586 = vector.shape_cast %585 : vector<128xf32> to vector<1x128xf32>
    %587 = arith.mulf %584, %584 : vector<32x128xf32>
    %cst_189 = arith.constant dense<0.000000e+00> : vector<128xf32>
    %588 = vector.multi_reduction <add>, %587, %cst_189 [0] : vector<32x128xf32> to vector<128xf32>
    %589 = vector.shape_cast %588 : vector<128xf32> to vector<1x128xf32>
    %cst_190 = arith.constant -5.000000e-01 : f32
    %590 = vector.broadcast %cst_190 : f32 to vector<1x128xf32>
    %591 = arith.mulf %590, %589 : vector<1x128xf32>
    %cst_191 = arith.constant -29.4060326 : f32
    %592 = vector.broadcast %cst_191 : f32 to vector<1x128xf32>
    %593 = arith.addf %591, %592 : vector<1x128xf32>
    %cst_192 = arith.constant 4.000000e+00 : f32
    %594 = vector.broadcast %cst_192 : f32 to vector<1x128xf32>
    %595 = arith.mulf %594, %586 : vector<1x128xf32>
    %596 = arith.subf %589, %595 : vector<1x128xf32>
    %cst_193 = arith.constant 1.280000e+02 : f32
    %597 = vector.broadcast %cst_193 : f32 to vector<1x128xf32>
    %598 = arith.addf %596, %597 : vector<1x128xf32>
    %cst_194 = arith.constant -2.000000e+00 : f32
    %599 = vector.broadcast %cst_194 : f32 to vector<1x128xf32>
    %600 = arith.mulf %599, %598 : vector<1x128xf32>
    %cst_195 = arith.constant -7.91847038 : f32
    %601 = vector.broadcast %cst_195 : f32 to vector<1x128xf32>
    %602 = arith.addf %600, %601 : vector<1x128xf32>
    %cst_196 = arith.constant 4.000000e+00 : f32
    %603 = vector.broadcast %cst_196 : f32 to vector<1x128xf32>
    %604 = arith.mulf %603, %586 : vector<1x128xf32>
    %605 = arith.addf %589, %604 : vector<1x128xf32>
    %cst_197 = arith.constant 1.280000e+02 : f32
    %606 = vector.broadcast %cst_197 : f32 to vector<1x128xf32>
    %607 = arith.addf %605, %606 : vector<1x128xf32>
    %cst_198 = arith.constant -2.000000e+00 : f32
    %608 = vector.broadcast %cst_198 : f32 to vector<1x128xf32>
    %609 = arith.mulf %608, %607 : vector<1x128xf32>
    %cst_199 = arith.constant -7.91847038 : f32
    %610 = vector.broadcast %cst_199 : f32 to vector<1x128xf32>
    %611 = arith.addf %609, %610 : vector<1x128xf32>
    %612 = arith.maximumf %602, %611 : vector<1x128xf32>
    %613 = arith.subf %602, %612 : vector<1x128xf32>
    %614 = math.exp %613 : vector<1x128xf32>
    %615 = arith.subf %611, %612 : vector<1x128xf32>
    %616 = math.exp %615 : vector<1x128xf32>
    %617 = arith.addf %614, %616 : vector<1x128xf32>
    %618 = math.log %617 : vector<1x128xf32>
    %619 = arith.addf %612, %618 : vector<1x128xf32>
    %620 = arith.subf %619, %593 : vector<1x128xf32>
    %cst_200 = arith.constant 6.250000e-02 : f32
    %621 = vector.broadcast %cst_200 : f32 to vector<1x128xf32>
    %622 = arith.mulf %621, %620 : vector<1x128xf32>
    %623 = arith.addf %570, %622 : vector<1x128xf32>
    %624 = arith.subf %614, %616 : vector<1x128xf32>
    %625 = arith.divf %624, %617 : vector<1x128xf32>
    %cst_201 = arith.constant -2.500000e-01 : f32
    %626 = vector.broadcast %cst_201 : f32 to vector<32x128xf32>
    %627 = arith.mulf %626, %584 : vector<32x128xf32>
    %cst_202 = arith.constant 2.000000e+00 : f32
    %628 = vector.broadcast %cst_202 : f32 to vector<1x128xf32>
    %629 = arith.mulf %628, %625 : vector<1x128xf32>
    %630 = vector.broadcast %629 : vector<1x128xf32> to vector<32x128xf32>
    %631 = arith.subf %584, %630 : vector<32x128xf32>
    %cst_203 = arith.constant 3.000000e+00 : f32
    %632 = vector.broadcast %cst_203 : f32 to vector<32x128xf32>
    %633 = arith.mulf %632, %631 : vector<32x128xf32>
    %634 = arith.subf %627, %633 : vector<32x128xf32>
    %cst_204 = arith.constant 5.000000e-02 : f32
    %635 = vector.broadcast %cst_204 : f32 to vector<32x128xf32>
    %636 = arith.mulf %635, %634 : vector<32x128xf32>
    %637 = arith.addf %584, %636 : vector<32x128xf32>
    %cst_205 = arith.constant dense<0.000000e+00> : vector<128xf32>
    %638 = vector.multi_reduction <add>, %637, %cst_205 [0] : vector<32x128xf32> to vector<128xf32>
    %639 = vector.shape_cast %638 : vector<128xf32> to vector<1x128xf32>
    %640 = arith.mulf %637, %637 : vector<32x128xf32>
    %cst_206 = arith.constant dense<0.000000e+00> : vector<128xf32>
    %641 = vector.multi_reduction <add>, %640, %cst_206 [0] : vector<32x128xf32> to vector<128xf32>
    %642 = vector.shape_cast %641 : vector<128xf32> to vector<1x128xf32>
    %cst_207 = arith.constant -5.000000e-01 : f32
    %643 = vector.broadcast %cst_207 : f32 to vector<1x128xf32>
    %644 = arith.mulf %643, %642 : vector<1x128xf32>
    %cst_208 = arith.constant -29.4060326 : f32
    %645 = vector.broadcast %cst_208 : f32 to vector<1x128xf32>
    %646 = arith.addf %644, %645 : vector<1x128xf32>
    %cst_209 = arith.constant 4.000000e+00 : f32
    %647 = vector.broadcast %cst_209 : f32 to vector<1x128xf32>
    %648 = arith.mulf %647, %639 : vector<1x128xf32>
    %649 = arith.subf %642, %648 : vector<1x128xf32>
    %cst_210 = arith.constant 1.280000e+02 : f32
    %650 = vector.broadcast %cst_210 : f32 to vector<1x128xf32>
    %651 = arith.addf %649, %650 : vector<1x128xf32>
    %cst_211 = arith.constant -2.000000e+00 : f32
    %652 = vector.broadcast %cst_211 : f32 to vector<1x128xf32>
    %653 = arith.mulf %652, %651 : vector<1x128xf32>
    %cst_212 = arith.constant -7.91847038 : f32
    %654 = vector.broadcast %cst_212 : f32 to vector<1x128xf32>
    %655 = arith.addf %653, %654 : vector<1x128xf32>
    %cst_213 = arith.constant 4.000000e+00 : f32
    %656 = vector.broadcast %cst_213 : f32 to vector<1x128xf32>
    %657 = arith.mulf %656, %639 : vector<1x128xf32>
    %658 = arith.addf %642, %657 : vector<1x128xf32>
    %cst_214 = arith.constant 1.280000e+02 : f32
    %659 = vector.broadcast %cst_214 : f32 to vector<1x128xf32>
    %660 = arith.addf %658, %659 : vector<1x128xf32>
    %cst_215 = arith.constant -2.000000e+00 : f32
    %661 = vector.broadcast %cst_215 : f32 to vector<1x128xf32>
    %662 = arith.mulf %661, %660 : vector<1x128xf32>
    %cst_216 = arith.constant -7.91847038 : f32
    %663 = vector.broadcast %cst_216 : f32 to vector<1x128xf32>
    %664 = arith.addf %662, %663 : vector<1x128xf32>
    %665 = arith.maximumf %655, %664 : vector<1x128xf32>
    %666 = arith.subf %655, %665 : vector<1x128xf32>
    %667 = math.exp %666 : vector<1x128xf32>
    %668 = arith.subf %664, %665 : vector<1x128xf32>
    %669 = math.exp %668 : vector<1x128xf32>
    %670 = arith.addf %667, %669 : vector<1x128xf32>
    %671 = math.log %670 : vector<1x128xf32>
    %672 = arith.addf %665, %671 : vector<1x128xf32>
    %673 = arith.subf %672, %646 : vector<1x128xf32>
    %cst_217 = arith.constant 6.250000e-02 : f32
    %674 = vector.broadcast %cst_217 : f32 to vector<1x128xf32>
    %675 = arith.mulf %674, %673 : vector<1x128xf32>
    %676 = arith.addf %623, %675 : vector<1x128xf32>
    %677 = arith.subf %667, %669 : vector<1x128xf32>
    %678 = arith.divf %677, %670 : vector<1x128xf32>
    %cst_218 = arith.constant -1.875000e-01 : f32
    %679 = vector.broadcast %cst_218 : f32 to vector<32x128xf32>
    %680 = arith.mulf %679, %637 : vector<32x128xf32>
    %cst_219 = arith.constant 2.000000e+00 : f32
    %681 = vector.broadcast %cst_219 : f32 to vector<1x128xf32>
    %682 = arith.mulf %681, %678 : vector<1x128xf32>
    %683 = vector.broadcast %682 : vector<1x128xf32> to vector<32x128xf32>
    %684 = arith.subf %637, %683 : vector<32x128xf32>
    %cst_220 = arith.constant 3.250000e+00 : f32
    %685 = vector.broadcast %cst_220 : f32 to vector<32x128xf32>
    %686 = arith.mulf %685, %684 : vector<32x128xf32>
    %687 = arith.subf %680, %686 : vector<32x128xf32>
    %cst_221 = arith.constant 5.000000e-02 : f32
    %688 = vector.broadcast %cst_221 : f32 to vector<32x128xf32>
    %689 = arith.mulf %688, %687 : vector<32x128xf32>
    %690 = arith.addf %637, %689 : vector<32x128xf32>
    %cst_222 = arith.constant dense<0.000000e+00> : vector<128xf32>
    %691 = vector.multi_reduction <add>, %690, %cst_222 [0] : vector<32x128xf32> to vector<128xf32>
    %692 = vector.shape_cast %691 : vector<128xf32> to vector<1x128xf32>
    %693 = arith.mulf %690, %690 : vector<32x128xf32>
    %cst_223 = arith.constant dense<0.000000e+00> : vector<128xf32>
    %694 = vector.multi_reduction <add>, %693, %cst_223 [0] : vector<32x128xf32> to vector<128xf32>
    %695 = vector.shape_cast %694 : vector<128xf32> to vector<1x128xf32>
    %cst_224 = arith.constant -5.000000e-01 : f32
    %696 = vector.broadcast %cst_224 : f32 to vector<1x128xf32>
    %697 = arith.mulf %696, %695 : vector<1x128xf32>
    %cst_225 = arith.constant -29.4060326 : f32
    %698 = vector.broadcast %cst_225 : f32 to vector<1x128xf32>
    %699 = arith.addf %697, %698 : vector<1x128xf32>
    %cst_226 = arith.constant 4.000000e+00 : f32
    %700 = vector.broadcast %cst_226 : f32 to vector<1x128xf32>
    %701 = arith.mulf %700, %692 : vector<1x128xf32>
    %702 = arith.subf %695, %701 : vector<1x128xf32>
    %cst_227 = arith.constant 1.280000e+02 : f32
    %703 = vector.broadcast %cst_227 : f32 to vector<1x128xf32>
    %704 = arith.addf %702, %703 : vector<1x128xf32>
    %cst_228 = arith.constant -2.000000e+00 : f32
    %705 = vector.broadcast %cst_228 : f32 to vector<1x128xf32>
    %706 = arith.mulf %705, %704 : vector<1x128xf32>
    %cst_229 = arith.constant -7.91847038 : f32
    %707 = vector.broadcast %cst_229 : f32 to vector<1x128xf32>
    %708 = arith.addf %706, %707 : vector<1x128xf32>
    %cst_230 = arith.constant 4.000000e+00 : f32
    %709 = vector.broadcast %cst_230 : f32 to vector<1x128xf32>
    %710 = arith.mulf %709, %692 : vector<1x128xf32>
    %711 = arith.addf %695, %710 : vector<1x128xf32>
    %cst_231 = arith.constant 1.280000e+02 : f32
    %712 = vector.broadcast %cst_231 : f32 to vector<1x128xf32>
    %713 = arith.addf %711, %712 : vector<1x128xf32>
    %cst_232 = arith.constant -2.000000e+00 : f32
    %714 = vector.broadcast %cst_232 : f32 to vector<1x128xf32>
    %715 = arith.mulf %714, %713 : vector<1x128xf32>
    %cst_233 = arith.constant -7.91847038 : f32
    %716 = vector.broadcast %cst_233 : f32 to vector<1x128xf32>
    %717 = arith.addf %715, %716 : vector<1x128xf32>
    %718 = arith.maximumf %708, %717 : vector<1x128xf32>
    %719 = arith.subf %708, %718 : vector<1x128xf32>
    %720 = math.exp %719 : vector<1x128xf32>
    %721 = arith.subf %717, %718 : vector<1x128xf32>
    %722 = math.exp %721 : vector<1x128xf32>
    %723 = arith.addf %720, %722 : vector<1x128xf32>
    %724 = math.log %723 : vector<1x128xf32>
    %725 = arith.addf %718, %724 : vector<1x128xf32>
    %726 = arith.subf %725, %699 : vector<1x128xf32>
    %cst_234 = arith.constant 6.250000e-02 : f32
    %727 = vector.broadcast %cst_234 : f32 to vector<1x128xf32>
    %728 = arith.mulf %727, %726 : vector<1x128xf32>
    %729 = arith.addf %676, %728 : vector<1x128xf32>
    %730 = arith.subf %720, %722 : vector<1x128xf32>
    %731 = arith.divf %730, %723 : vector<1x128xf32>
    %cst_235 = arith.constant -1.250000e-01 : f32
    %732 = vector.broadcast %cst_235 : f32 to vector<32x128xf32>
    %733 = arith.mulf %732, %690 : vector<32x128xf32>
    %cst_236 = arith.constant 2.000000e+00 : f32
    %734 = vector.broadcast %cst_236 : f32 to vector<1x128xf32>
    %735 = arith.mulf %734, %731 : vector<1x128xf32>
    %736 = vector.broadcast %735 : vector<1x128xf32> to vector<32x128xf32>
    %737 = arith.subf %690, %736 : vector<32x128xf32>
    %cst_237 = arith.constant 3.500000e+00 : f32
    %738 = vector.broadcast %cst_237 : f32 to vector<32x128xf32>
    %739 = arith.mulf %738, %737 : vector<32x128xf32>
    %740 = arith.subf %733, %739 : vector<32x128xf32>
    %cst_238 = arith.constant 5.000000e-02 : f32
    %741 = vector.broadcast %cst_238 : f32 to vector<32x128xf32>
    %742 = arith.mulf %741, %740 : vector<32x128xf32>
    %743 = arith.addf %690, %742 : vector<32x128xf32>
    %cst_239 = arith.constant dense<0.000000e+00> : vector<128xf32>
    %744 = vector.multi_reduction <add>, %743, %cst_239 [0] : vector<32x128xf32> to vector<128xf32>
    %745 = vector.shape_cast %744 : vector<128xf32> to vector<1x128xf32>
    %746 = arith.mulf %743, %743 : vector<32x128xf32>
    %cst_240 = arith.constant dense<0.000000e+00> : vector<128xf32>
    %747 = vector.multi_reduction <add>, %746, %cst_240 [0] : vector<32x128xf32> to vector<128xf32>
    %748 = vector.shape_cast %747 : vector<128xf32> to vector<1x128xf32>
    %cst_241 = arith.constant -5.000000e-01 : f32
    %749 = vector.broadcast %cst_241 : f32 to vector<1x128xf32>
    %750 = arith.mulf %749, %748 : vector<1x128xf32>
    %cst_242 = arith.constant -29.4060326 : f32
    %751 = vector.broadcast %cst_242 : f32 to vector<1x128xf32>
    %752 = arith.addf %750, %751 : vector<1x128xf32>
    %cst_243 = arith.constant 4.000000e+00 : f32
    %753 = vector.broadcast %cst_243 : f32 to vector<1x128xf32>
    %754 = arith.mulf %753, %745 : vector<1x128xf32>
    %755 = arith.subf %748, %754 : vector<1x128xf32>
    %cst_244 = arith.constant 1.280000e+02 : f32
    %756 = vector.broadcast %cst_244 : f32 to vector<1x128xf32>
    %757 = arith.addf %755, %756 : vector<1x128xf32>
    %cst_245 = arith.constant -2.000000e+00 : f32
    %758 = vector.broadcast %cst_245 : f32 to vector<1x128xf32>
    %759 = arith.mulf %758, %757 : vector<1x128xf32>
    %cst_246 = arith.constant -7.91847038 : f32
    %760 = vector.broadcast %cst_246 : f32 to vector<1x128xf32>
    %761 = arith.addf %759, %760 : vector<1x128xf32>
    %cst_247 = arith.constant 4.000000e+00 : f32
    %762 = vector.broadcast %cst_247 : f32 to vector<1x128xf32>
    %763 = arith.mulf %762, %745 : vector<1x128xf32>
    %764 = arith.addf %748, %763 : vector<1x128xf32>
    %cst_248 = arith.constant 1.280000e+02 : f32
    %765 = vector.broadcast %cst_248 : f32 to vector<1x128xf32>
    %766 = arith.addf %764, %765 : vector<1x128xf32>
    %cst_249 = arith.constant -2.000000e+00 : f32
    %767 = vector.broadcast %cst_249 : f32 to vector<1x128xf32>
    %768 = arith.mulf %767, %766 : vector<1x128xf32>
    %cst_250 = arith.constant -7.91847038 : f32
    %769 = vector.broadcast %cst_250 : f32 to vector<1x128xf32>
    %770 = arith.addf %768, %769 : vector<1x128xf32>
    %771 = arith.maximumf %761, %770 : vector<1x128xf32>
    %772 = arith.subf %761, %771 : vector<1x128xf32>
    %773 = math.exp %772 : vector<1x128xf32>
    %774 = arith.subf %770, %771 : vector<1x128xf32>
    %775 = math.exp %774 : vector<1x128xf32>
    %776 = arith.addf %773, %775 : vector<1x128xf32>
    %777 = math.log %776 : vector<1x128xf32>
    %778 = arith.addf %771, %777 : vector<1x128xf32>
    %779 = arith.subf %778, %752 : vector<1x128xf32>
    %cst_251 = arith.constant 6.250000e-02 : f32
    %780 = vector.broadcast %cst_251 : f32 to vector<1x128xf32>
    %781 = arith.mulf %780, %779 : vector<1x128xf32>
    %782 = arith.addf %729, %781 : vector<1x128xf32>
    %783 = arith.subf %773, %775 : vector<1x128xf32>
    %784 = arith.divf %783, %776 : vector<1x128xf32>
    %cst_252 = arith.constant -6.250000e-02 : f32
    %785 = vector.broadcast %cst_252 : f32 to vector<32x128xf32>
    %786 = arith.mulf %785, %743 : vector<32x128xf32>
    %cst_253 = arith.constant 2.000000e+00 : f32
    %787 = vector.broadcast %cst_253 : f32 to vector<1x128xf32>
    %788 = arith.mulf %787, %784 : vector<1x128xf32>
    %789 = vector.broadcast %788 : vector<1x128xf32> to vector<32x128xf32>
    %790 = arith.subf %743, %789 : vector<32x128xf32>
    %cst_254 = arith.constant 3.750000e+00 : f32
    %791 = vector.broadcast %cst_254 : f32 to vector<32x128xf32>
    %792 = arith.mulf %791, %790 : vector<32x128xf32>
    %793 = arith.subf %786, %792 : vector<32x128xf32>
    %cst_255 = arith.constant 5.000000e-02 : f32
    %794 = vector.broadcast %cst_255 : f32 to vector<32x128xf32>
    %795 = arith.mulf %794, %793 : vector<32x128xf32>
    %796 = arith.addf %743, %795 : vector<32x128xf32>
    %cst_256 = arith.constant dense<0.000000e+00> : vector<128xf32>
    %797 = vector.multi_reduction <add>, %796, %cst_256 [0] : vector<32x128xf32> to vector<128xf32>
    %798 = vector.shape_cast %797 : vector<128xf32> to vector<1x128xf32>
    %799 = arith.mulf %796, %796 : vector<32x128xf32>
    %cst_257 = arith.constant dense<0.000000e+00> : vector<128xf32>
    %800 = vector.multi_reduction <add>, %799, %cst_257 [0] : vector<32x128xf32> to vector<128xf32>
    %801 = vector.shape_cast %800 : vector<128xf32> to vector<1x128xf32>
    %cst_258 = arith.constant -5.000000e-01 : f32
    %802 = vector.broadcast %cst_258 : f32 to vector<1x128xf32>
    %803 = arith.mulf %802, %801 : vector<1x128xf32>
    %cst_259 = arith.constant -29.4060326 : f32
    %804 = vector.broadcast %cst_259 : f32 to vector<1x128xf32>
    %805 = arith.addf %803, %804 : vector<1x128xf32>
    %cst_260 = arith.constant 4.000000e+00 : f32
    %806 = vector.broadcast %cst_260 : f32 to vector<1x128xf32>
    %807 = arith.mulf %806, %798 : vector<1x128xf32>
    %808 = arith.subf %801, %807 : vector<1x128xf32>
    %cst_261 = arith.constant 1.280000e+02 : f32
    %809 = vector.broadcast %cst_261 : f32 to vector<1x128xf32>
    %810 = arith.addf %808, %809 : vector<1x128xf32>
    %cst_262 = arith.constant -2.000000e+00 : f32
    %811 = vector.broadcast %cst_262 : f32 to vector<1x128xf32>
    %812 = arith.mulf %811, %810 : vector<1x128xf32>
    %cst_263 = arith.constant -7.91847038 : f32
    %813 = vector.broadcast %cst_263 : f32 to vector<1x128xf32>
    %814 = arith.addf %812, %813 : vector<1x128xf32>
    %cst_264 = arith.constant 4.000000e+00 : f32
    %815 = vector.broadcast %cst_264 : f32 to vector<1x128xf32>
    %816 = arith.mulf %815, %798 : vector<1x128xf32>
    %817 = arith.addf %801, %816 : vector<1x128xf32>
    %cst_265 = arith.constant 1.280000e+02 : f32
    %818 = vector.broadcast %cst_265 : f32 to vector<1x128xf32>
    %819 = arith.addf %817, %818 : vector<1x128xf32>
    %cst_266 = arith.constant -2.000000e+00 : f32
    %820 = vector.broadcast %cst_266 : f32 to vector<1x128xf32>
    %821 = arith.mulf %820, %819 : vector<1x128xf32>
    %cst_267 = arith.constant -7.91847038 : f32
    %822 = vector.broadcast %cst_267 : f32 to vector<1x128xf32>
    %823 = arith.addf %821, %822 : vector<1x128xf32>
    %824 = arith.maximumf %814, %823 : vector<1x128xf32>
    %825 = arith.subf %814, %824 : vector<1x128xf32>
    %826 = math.exp %825 : vector<1x128xf32>
    %827 = arith.subf %823, %824 : vector<1x128xf32>
    %828 = math.exp %827 : vector<1x128xf32>
    %829 = arith.addf %826, %828 : vector<1x128xf32>
    %830 = math.log %829 : vector<1x128xf32>
    %831 = arith.addf %824, %830 : vector<1x128xf32>
    %832 = arith.subf %831, %805 : vector<1x128xf32>
    %cst_268 = arith.constant 6.250000e-02 : f32
    %833 = vector.broadcast %cst_268 : f32 to vector<1x128xf32>
    %834 = arith.mulf %833, %832 : vector<1x128xf32>
    %835 = arith.addf %782, %834 : vector<1x128xf32>
    %836 = arith.subf %826, %828 : vector<1x128xf32>
    %837 = arith.divf %836, %829 : vector<1x128xf32>
    %cst_269 = arith.constant 0.000000e+00 : f32
    %838 = vector.broadcast %cst_269 : f32 to vector<32x128xf32>
    %839 = arith.mulf %838, %796 : vector<32x128xf32>
    %cst_270 = arith.constant 2.000000e+00 : f32
    %840 = vector.broadcast %cst_270 : f32 to vector<1x128xf32>
    %841 = arith.mulf %840, %837 : vector<1x128xf32>
    %842 = vector.broadcast %841 : vector<1x128xf32> to vector<32x128xf32>
    %843 = arith.subf %796, %842 : vector<32x128xf32>
    %cst_271 = arith.constant 4.000000e+00 : f32
    %844 = vector.broadcast %cst_271 : f32 to vector<32x128xf32>
    %845 = arith.mulf %844, %843 : vector<32x128xf32>
    %846 = arith.subf %839, %845 : vector<32x128xf32>
    %cst_272 = arith.constant 5.000000e-02 : f32
    %847 = vector.broadcast %cst_272 : f32 to vector<32x128xf32>
    %848 = arith.mulf %847, %846 : vector<32x128xf32>
    %849 = arith.addf %796, %848 : vector<32x128xf32>
    %c0_273 = arith.constant 0 : index
    %c0_274 = arith.constant 0 : index
    %850 = vector.load %arg2[%c0_273, %c0_274] : memref<1x128xf32, #tpu.memory_space<vmem>>, vector<1x128xf32>
    tpu.vector_store %arg2[%c0_273, %c0_274], %835 {strides = array<i32>} : memref<1x128xf32, #tpu.memory_space<vmem>>, vector<1x128xf32>,
    %c0_275 = arith.constant 0 : index
    %c0_276 = arith.constant 0 : index
    %851 = vector.load %arg3[%c0_275, %c0_276] : memref<32x128xf32, #tpu.memory_space<vmem>>, vector<32x128xf32>
    tpu.vector_store %arg3[%c0_275, %c0_276], %849 {strides = array<i32>} : memref<32x128xf32, #tpu.memory_space<vmem>>, vector<32x128xf32>,
    return
  }
  func.func @transform_0(%arg0: i32) -> (i32, i32) {
    %c0_i32 = arith.constant 0 : i32
    %c0_i32_0 = arith.constant 0 : i32
    return %c0_i32, %arg0 : i32, i32
  }
  func.func @transform_1(%arg0: i32) -> (i32, i32) {
    %c0_i32 = arith.constant 0 : i32
    %c0_i32_0 = arith.constant 0 : i32
    return %c0_i32, %arg0 : i32, i32
  }
  func.func @transform_2(%arg0: i32) -> (i32, i32) {
    %c0_i32 = arith.constant 0 : i32
    %c0_i32_0 = arith.constant 0 : i32
    return %c0_i32, %arg0 : i32, i32
  }
}

</mosaic_0001>

<llo_original>
// kernel: tpu_custom_call.1
$region0: #{tpu_custom_call.1}
  #allocation0 [shape = 'u32[]', space=smem, size = 0x4, offset = 0x4, fixed_abs, tag = 'smem constant byte address 0x4 - core index']
  #allocation1 [shape = 'u32[72,128]{1,0:T(1,128)}', space=vmem, size = 0x9000, scoped, tag = 'internal scratch']
  %s0 = inlined_call_operand.hbm [shape: f32[32,128], index: 0, kind: input, shape index: {}]
  %s1 = inlined_call_operand.hbm [shape: f32[1,128], index: 1, kind: output, shape index: {0}]
  %s2 = inlined_call_operand.hbm [shape: f32[32,128], index: 2, kind: output, shape index: {1}]
  %3 = xla_tuple %s1, %s2
  %s4 = sld [smem:[#allocation0]]
  $region26: #{tpu_custom_call.1} parent=0
    _
  %s6 = ssub.s32 1, %s4
  %s7 = scalar_select 0, %s6, %s4
  $region1: #{tpu_custom_call.1} parent=0
    #allocation2 [shape = 'u8[16384]{0}', space=vmem, size = 0x4000, scoped, tag = 'input window, operand 0, single buffered']
    #allocation3 [shape = 's32[1]{0}', space=sflag, size = 0x4, scoped, tag = 'scoped memory for tpu_custom_call.1']
    #allocation4 [shape = 's32[1]{0}', space=sflag, size = 0x4, scoped, tag = 'scoped memory for tpu_custom_call.1']
    #allocation5 [shape = 'u8[512]{0}', space=vmem, size = 0x400, scoped, tag = 'output window, operand 0, single buffered']
    #allocation6 [shape = 'u8[16384]{0}', space=vmem, size = 0x4000, scoped, tag = 'output window, operand 1, single buffered']
    #allocation7 [shape = 's32[1]{0}', space=sflag, size = 0x4, scoped, tag = 'scoped memory for tpu_custom_call.1']
    %8 = vsyncpa [#allocation3], 0
    %9 = vsyncpa [#allocation4], 0
    %10 = vsyncpa [#allocation7], 0
    // Predicated region
    $region2: #{tpu_custom_call.1} parent=1 // pred_check
      _
    $region3: #{tpu_custom_call.1} parent=1 // pred_check_branch
      %12 = sbr.rel (0) target = $region5
    $region4: #{tpu_custom_call.1} parent=1 // pred_region
      %14 = vsyncadd [#allocation3], 0
      %s15 = sshll.u32 %s0, 4
      %s16 = int_to_ptr.hbm [resolvable:$true] %s15
      %s17 = sshll.u32 [#allocation2], 4
      %s18 = int_to_ptr.vmem [resolvable:$true] %s17
      %23 = dma.hbm_to_vmem [thread:$0]  %s16, 512, %s18, [#allocation3], 128, 128, 8
    $region5: #{tpu_custom_call.1} parent=1 // pred_fallthru
      _
    // Predicated region
    $region6: #{tpu_custom_call.1} parent=1 // pred_check
      _
    $region7: #{tpu_custom_call.1} parent=1 // pred_check_branch
      %25 = sbr.rel (0) target = $region9
    $region8: #{tpu_custom_call.1} parent=1 // pred_region
      %27 = dma.done [#allocation3], 512
    $region9: #{tpu_custom_call.1} parent=1 // pred_fallthru
      _
    %v28 = vld [vmem:[#allocation2] sm:$0xff]
    %v29 = vld [vmem:[#allocation2 + $0x8] sm:$0xff]
    %v30 = vld [vmem:[#allocation2 + $0x10] sm:$0xff]
    %v31 = vld [vmem:[#allocation2 + $0x18] sm:$0xff]
    %v32 = vadd.f32 %v28, %v29
    %v33 = vadd.f32 %v32, %v30
    %v34 = vadd.f32 %v33, %v31
    %v35 = vrot.slane %v34, 4
    %v36 = vadd.f32 %v34, %v35
    %v37 = vrot.slane %v36, 2
    %v38 = vadd.f32 %v36, %v37
    %v39 = vrot.slane %v38, 1
    %v40 = vadd.f32 %v38, %v39
    %v41 = vmul.f32 %v28, %v28
    %v42 = vmul.f32 %v29, %v29
    %v43 = vmul.f32 %v30, %v30
    %v44 = vmul.f32 %v31, %v31
    %v45 = vadd.f32 %v41, %v42
    %v46 = vadd.f32 %v45, %v43
    %v47 = vadd.f32 %v46, %v44
    %v48 = vrot.slane %v47, 4
    %v49 = vadd.f32 %v47, %v48
    %v50 = vrot.slane %v49, 2
    %v51 = vadd.f32 %v49, %v50
    %v52 = vrot.slane %v51, 1
    %v53 = vadd.f32 %v51, %v52
    %v54 = vmul.f32 %v53, -0.5
    %v55 = vadd.f32 %v54, -29.406033
    %v56 = vmul.f32 %v40, 4.0
    %v57 = vsub.f32 %v53, %v56
    %v58 = vadd.f32 %v57, 128.0
    %v59 = vmul.f32 %v58, -2.0
    %v60 = vadd.f32 %v59, -7.9184704
    %v61 = vadd.f32 %v53, %v56
    %v62 = vadd.f32 %v61, 128.0
    %v63 = vmul.f32 %v62, -2.0
    %v64 = vadd.f32 %v63, -7.9184704
    %v65 = vmax.f32 %v60, %v64
    %v66 = vsub.f32 %v60, %v65
    %v67 = vmul.f32 %v66, 1.442695
    %v68 = vpow.pop %v67
    %v69 = vsub.f32 %v64, %v65
    %v70 = vmul.f32 %v69, 1.442695
    %v71 = vpow.pop %v70
    %v72 = vadd.f32 %v68, %v71
    %v73 = vlog2.pop %v72
    %v74 = vmul.f32 %v73, 0.6931472
    %v75 = vadd.f32 %v65, %v74
    %v76 = vsub.f32 %v75, %v55
    %v77 = vmul.f32 %v76, 0.0625
    %v78 = vadd.f32 %v77, 0.0
    %v79 = vsub.f32 %v68, %v71
    %v80 = vrcp.pop %v72
    %v81 = vmul.f32 %v72, %v80
    %v82 = vsub.f32 1.0, %v81
    %v83 = vmul.f32 %v80, %v82
    %v84 = vadd.f32 %v80, %v83
    %vm85 = vweird.f32 %v72
    %vm86 = vweird.f32 %v80
    %vm87 = vmor %vm85, %vm86
    %v88 = vsel %vm87, %v80, %v84
    %v89 = vand.u32 2147483647, %v72
    %vm90 = vcmp.eq.f32.partialorder %v89, 8.507059e+37
    %v91 = vand.u32 %v72, 2147483648
    %v92 = vor.u32 1.1754944e-38, %v91
    %v93 = vsel %vm90, %v92, %v88
    %v94 = vmul.f32 %v79, %v93
    %v95 = vmul.f32 %v28, -0.9375
    %v96 = vmul.f32 %v29, -0.9375
    %v97 = vmul.f32 %v30, -0.9375
    %v98 = vmul.f32 %v31, -0.9375
    %v99 = vmul.f32 %v94, 2.0
    %v100 = vsub.f32 %v28, %v99
    %v101 = vsub.f32 %v29, %v99
    %v102 = vsub.f32 %v30, %v99
    %v103 = vsub.f32 %v31, %v99
    %v104 = vmul.f32 %v100, 0.25
    %v105 = vmul.f32 %v101, 0.25
    %v106 = vmul.f32 %v102, 0.25
    %v107 = vmul.f32 %v103, 0.25
    %v108 = vsub.f32 %v95, %v104
    %v109 = vsub.f32 %v96, %v105
    %v110 = vsub.f32 %v97, %v106
    %v111 = vsub.f32 %v98, %v107
    %v112 = vmul.f32 %v108, 0.05
    %v113 = vmul.f32 %v109, 0.05
    %v114 = vmul.f32 %v110, 0.05
    %v115 = vmul.f32 %v111, 0.05
    %v116 = vadd.f32 %v28, %v112
    %v117 = vadd.f32 %v29, %v113
    %v118 = vadd.f32 %v30, %v114
    %v119 = vadd.f32 %v31, %v115
    %v120 = vadd.f32 %v116, %v117
    %v121 = vadd.f32 %v120, %v118
    %v122 = vadd.f32 %v121, %v119
    %v123 = vrot.slane %v122, 4
    %v124 = vadd.f32 %v122, %v123
    %v125 = vrot.slane %v124, 2
    %v126 = vadd.f32 %v124, %v125
    %v127 = vrot.slane %v126, 1
    %v128 = vadd.f32 %v126, %v127
    %v129 = vmul.f32 %v116, %v116
    %v130 = vmul.f32 %v117, %v117
    %v131 = vmul.f32 %v118, %v118
    %v132 = vmul.f32 %v119, %v119
    %v133 = vadd.f32 %v129, %v130
    %v134 = vadd.f32 %v133, %v131
    %v135 = vadd.f32 %v134, %v132
    %v136 = vrot.slane %v135, 4
    %v137 = vadd.f32 %v135, %v136
    %v138 = vrot.slane %v137, 2
    %v139 = vadd.f32 %v137, %v138
    %v140 = vrot.slane %v139, 1
    %v141 = vadd.f32 %v139, %v140
    %v142 = vmul.f32 %v141, -0.5
    %v143 = vadd.f32 %v142, -29.406033
    %v144 = vmul.f32 %v128, 4.0
    %v145 = vsub.f32 %v141, %v144
    %v146 = vadd.f32 %v145, 128.0
    %v147 = vmul.f32 %v146, -2.0
    %v148 = vadd.f32 %v147, -7.9184704
    %v149 = vadd.f32 %v141, %v144
    %v150 = vadd.f32 %v149, 128.0
    %v151 = vmul.f32 %v150, -2.0
    %v152 = vadd.f32 %v151, -7.9184704
    %v153 = vmax.f32 %v148, %v152
    %v154 = vsub.f32 %v148, %v153
    %v155 = vmul.f32 %v154, 1.442695
    %v156 = vpow.pop %v155
    %v157 = vsub.f32 %v152, %v153
    %v158 = vmul.f32 %v157, 1.442695
    %v159 = vpow.pop %v158
    %v160 = vadd.f32 %v156, %v159
    %v161 = vlog2.pop %v160
    %v162 = vmul.f32 %v161, 0.6931472
    %v163 = vadd.f32 %v153, %v162
    %v164 = vsub.f32 %v163, %v143
    %v165 = vmul.f32 %v164, 0.0625
    %v166 = vadd.f32 %v78, %v165
    %v167 = vsub.f32 %v156, %v159
    %v168 = vrcp.pop %v160
    %v169 = vmul.f32 %v160, %v168
    %v170 = vsub.f32 1.0, %v169
    %v171 = vmul.f32 %v168, %v170
    %v172 = vadd.f32 %v168, %v171
    %vm173 = vweird.f32 %v160
    %vm174 = vweird.f32 %v168
    %vm175 = vmor %vm173, %vm174
    %v176 = vsel %vm175, %v168, %v172
    %v177 = vand.u32 2147483647, %v160
    %vm178 = vcmp.eq.f32.partialorder %v177, 8.507059e+37
    %v179 = vand.u32 %v160, 2147483648
    %v180 = vor.u32 1.1754944e-38, %v179
    %v181 = vsel %vm178, %v180, %v176
    %v182 = vmul.f32 %v167, %v181
    %v183 = vmul.f32 %v116, -0.875
    %v184 = vmul.f32 %v117, -0.875
    %v185 = vmul.f32 %v118, -0.875
    %v186 = vmul.f32 %v119, -0.875
    %v187 = vmul.f32 %v182, 2.0
    %v188 = vsub.f32 %v116, %v187
    %v189 = vsub.f32 %v117, %v187
    %v190 = vsub.f32 %v118, %v187
    %v191 = vsub.f32 %v119, %v187
    %v192 = vmul.f32 %v188, 0.5
    %v193 = vmul.f32 %v189, 0.5
    %v194 = vmul.f32 %v190, 0.5
    %v195 = vmul.f32 %v191, 0.5
    %v196 = vsub.f32 %v183, %v192
    %v197 = vsub.f32 %v184, %v193
    %v198 = vsub.f32 %v185, %v194
    %v199 = vsub.f32 %v186, %v195
    %v200 = vmul.f32 %v196, 0.05
    %v201 = vmul.f32 %v197, 0.05
    %v202 = vmul.f32 %v198, 0.05
    %v203 = vmul.f32 %v199, 0.05
    %v204 = vadd.f32 %v116, %v200
    %v205 = vadd.f32 %v117, %v201
    %v206 = vadd.f32 %v118, %v202
    %v207 = vadd.f32 %v119, %v203
    %v208 = vadd.f32 %v204, %v205
    %v209 = vadd.f32 %v208, %v206
    %v210 = vadd.f32 %v209, %v207
    %v211 = vrot.slane %v210, 4
    %v212 = vadd.f32 %v210, %v211
    %v213 = vrot.slane %v212, 2
    %v214 = vadd.f32 %v212, %v213
    %v215 = vrot.slane %v214, 1
    %v216 = vadd.f32 %v214, %v215
    %v217 = vmul.f32 %v204, %v204
    %v218 = vmul.f32 %v205, %v205
    %v219 = vmul.f32 %v206, %v206
    %v220 = vmul.f32 %v207, %v207
    %v221 = vadd.f32 %v217, %v218
    %v222 = vadd.f32 %v221, %v219
    %v223 = vadd.f32 %v222, %v220
    %v224 = vrot.slane %v223, 4
    %v225 = vadd.f32 %v223, %v224
    %v226 = vrot.slane %v225, 2
    %v227 = vadd.f32 %v225, %v226
    %v228 = vrot.slane %v227, 1
    %v229 = vadd.f32 %v227, %v228
    %v230 = vmul.f32 %v229, -0.5
    %v231 = vadd.f32 %v230, -29.406033
    %v232 = vmul.f32 %v216, 4.0
    %v233 = vsub.f32 %v229, %v232
    %v234 = vadd.f32 %v233, 128.0
    %v235 = vmul.f32 %v234, -2.0
    %v236 = vadd.f32 %v235, -7.9184704
    %v237 = vadd.f32 %v229, %v232
    %v238 = vadd.f32 %v237, 128.0
    %v239 = vmul.f32 %v238, -2.0
    %v240 = vadd.f32 %v239, -7.9184704
    %v241 = vmax.f32 %v236, %v240
    %v242 = vsub.f32 %v236, %v241
    %v243 = vmul.f32 %v242, 1.442695
    %v244 = vpow.pop %v243
    %v245 = vsub.f32 %v240, %v241
    %v246 = vmul.f32 %v245, 1.442695
    %v247 = vpow.pop %v246
    %v248 = vadd.f32 %v244, %v247
    %v249 = vlog2.pop %v248
    %v250 = vmul.f32 %v249, 0.6931472
    %v251 = vadd.f32 %v241, %v250
    %v252 = vsub.f32 %v251, %v231
    %v253 = vmul.f32 %v252, 0.0625
    %v254 = vadd.f32 %v166, %v253
    %v255 = vsub.f32 %v244, %v247
    %v256 = vrcp.pop %v248
    %v257 = vmul.f32 %v248, %v256
    %v258 = vsub.f32 1.0, %v257
    %v259 = vmul.f32 %v256, %v258
    %v260 = vadd.f32 %v256, %v259
    %vm261 = vweird.f32 %v248
    %vm262 = vweird.f32 %v256
    %vm263 = vmor %vm261, %vm262
    %v264 = vsel %vm263, %v256, %v260
    %v265 = vand.u32 2147483647, %v248
    %vm266 = vcmp.eq.f32.partialorder %v265, 8.507059e+37
    %v267 = vand.u32 %v248, 2147483648
    %v268 = vor.u32 1.1754944e-38, %v267
    %v269 = vsel %vm266, %v268, %v264
    %v270 = vmul.f32 %v255, %v269
    %v271 = vmul.f32 %v204, -0.8125
    %v272 = vmul.f32 %v205, -0.8125
    %v273 = vmul.f32 %v206, -0.8125
    %v274 = vmul.f32 %v207, -0.8125
    %v275 = vmul.f32 %v270, 2.0
    %v276 = vsub.f32 %v204, %v275
    %v277 = vsub.f32 %v205, %v275
    %v278 = vsub.f32 %v206, %v275
    %v279 = vsub.f32 %v207, %v275
    %v280 = vmul.f32 %v276, 0.75
    %v281 = vmul.f32 %v277, 0.75
    %v282 = vmul.f32 %v278, 0.75
    %v283 = vmul.f32 %v279, 0.75
    %v284 = vsub.f32 %v271, %v280
    %v285 = vsub.f32 %v272, %v281
    %v286 = vsub.f32 %v273, %v282
    %v287 = vsub.f32 %v274, %v283
    %v288 = vmul.f32 %v284, 0.05
    %v289 = vmul.f32 %v285, 0.05
    %v290 = vmul.f32 %v286, 0.05
    %v291 = vmul.f32 %v287, 0.05
    %v292 = vadd.f32 %v204, %v288
    %v293 = vadd.f32 %v205, %v289
    %v294 = vadd.f32 %v206, %v290
    %v295 = vadd.f32 %v207, %v291
    %v296 = vadd.f32 %v292, %v293
    %v297 = vadd.f32 %v296, %v294
    %v298 = vadd.f32 %v297, %v295
    %v299 = vrot.slane %v298, 4
    %v300 = vadd.f32 %v298, %v299
    %v301 = vrot.slane %v300, 2
    %v302 = vadd.f32 %v300, %v301
    %v303 = vrot.slane %v302, 1
    %v304 = vadd.f32 %v302, %v303
    %v305 = vmul.f32 %v292, %v292
    %v306 = vmul.f32 %v293, %v293
    %v307 = vmul.f32 %v294, %v294
    %v308 = vmul.f32 %v295, %v295
    %v309 = vadd.f32 %v305, %v306
    %v310 = vadd.f32 %v309, %v307
    %v311 = vadd.f32 %v310, %v308
    %v312 = vrot.slane %v311, 4
    %v313 = vadd.f32 %v311, %v312
    %v314 = vrot.slane %v313, 2
    %v315 = vadd.f32 %v313, %v314
    %v316 = vrot.slane %v315, 1
    %v317 = vadd.f32 %v315, %v316
    %v318 = vmul.f32 %v317, -0.5
    %v319 = vadd.f32 %v318, -29.406033
    %v320 = vmul.f32 %v304, 4.0
    %v321 = vsub.f32 %v317, %v320
    %v322 = vadd.f32 %v321, 128.0
    %v323 = vmul.f32 %v322, -2.0
    %v324 = vadd.f32 %v323, -7.9184704
    %v325 = vadd.f32 %v317, %v320
    %v326 = vadd.f32 %v325, 128.0
    %v327 = vmul.f32 %v326, -2.0
    %v328 = vadd.f32 %v327, -7.9184704
    %v329 = vmax.f32 %v324, %v328
    %v330 = vsub.f32 %v324, %v329
    %v331 = vmul.f32 %v330, 1.442695
    %v332 = vpow.pop %v331
    %v333 = vsub.f32 %v328, %v329
    %v334 = vmul.f32 %v333, 1.442695
    %v335 = vpow.pop %v334
    %v336 = vadd.f32 %v332, %v335
    %v337 = vlog2.pop %v336
    %v338 = vmul.f32 %v337, 0.6931472
    %v339 = vadd.f32 %v329, %v338
    %v340 = vsub.f32 %v339, %v319
    %v341 = vmul.f32 %v340, 0.0625
    %v342 = vadd.f32 %v254, %v341
    %v343 = vsub.f32 %v332, %v335
    %v344 = vrcp.pop %v336
    %v345 = vmul.f32 %v336, %v344
    %v346 = vsub.f32 1.0, %v345
    %v347 = vmul.f32 %v344, %v346
    %v348 = vadd.f32 %v344, %v347
    %vm349 = vweird.f32 %v336
    %vm350 = vweird.f32 %v344
    %vm351 = vmor %vm349, %vm350
    %v352 = vsel %vm351, %v344, %v348
    %v353 = vand.u32 2147483647, %v336
    %vm354 = vcmp.eq.f32.partialorder %v353, 8.507059e+37
    %v355 = vand.u32 %v336, 2147483648
    %v356 = vor.u32 1.1754944e-38, %v355
    %v357 = vsel %vm354, %v356, %v352
    %v358 = vmul.f32 %v343, %v357
    %v359 = vmul.f32 %v292, -0.75
    %v360 = vmul.f32 %v293, -0.75
    %v361 = vmul.f32 %v294, -0.75
    %v362 = vmul.f32 %v295, -0.75
    %v363 = vmul.f32 %v358, 2.0
    %v364 = vsub.f32 %v292, %v363
    %v365 = vsub.f32 %v293, %v363
    %v366 = vsub.f32 %v294, %v363
    %v367 = vsub.f32 %v295, %v363
    %v368 = vsub.f32 %v359, %v364
    %v369 = vsub.f32 %v360, %v365
    %v370 = vsub.f32 %v361, %v366
    %v371 = vsub.f32 %v362, %v367
    %v372 = vmul.f32 %v368, 0.05
    %v373 = vmul.f32 %v369, 0.05
    %v374 = vmul.f32 %v370, 0.05
    %v375 = vmul.f32 %v371, 0.05
    %v376 = vadd.f32 %v292, %v372
    %v377 = vadd.f32 %v293, %v373
    %v378 = vadd.f32 %v294, %v374
    %v379 = vadd.f32 %v295, %v375
    %v380 = vadd.f32 %v376, %v377
    %v381 = vadd.f32 %v380, %v378
    %v382 = vadd.f32 %v381, %v379
    %v383 = vrot.slane %v382, 4
    %v384 = vadd.f32 %v382, %v383
    %v385 = vrot.slane %v384, 2
    %v386 = vadd.f32 %v384, %v385
    %v387 = vrot.slane %v386, 1
    %v388 = vadd.f32 %v386, %v387
    %v389 = vmul.f32 %v376, %v376
    %v390 = vmul.f32 %v377, %v377
    %v391 = vmul.f32 %v378, %v378
    %v392 = vmul.f32 %v379, %v379
    %v393 = vadd.f32 %v389, %v390
    %v394 = vadd.f32 %v393, %v391
    %v395 = vadd.f32 %v394, %v392
    %v396 = vrot.slane %v395, 4
    %v397 = vadd.f32 %v395, %v396
    %v398 = vrot.slane %v397, 2
    %v399 = vadd.f32 %v397, %v398
    %v400 = vrot.slane %v399, 1
    %v401 = vadd.f32 %v399, %v400
    %v402 = vmul.f32 %v401, -0.5
    %v403 = vadd.f32 %v402, -29.406033
    %v404 = vmul.f32 %v388, 4.0
    %v405 = vsub.f32 %v401, %v404
    %v406 = vadd.f32 %v405, 128.0
    %v407 = vmul.f32 %v406, -2.0
    %v408 = vadd.f32 %v407, -7.9184704
    %v409 = vadd.f32 %v401, %v404
    %v410 = vadd.f32 %v409, 128.0
    %v411 = vmul.f32 %v410, -2.0
    %v412 = vadd.f32 %v411, -7.9184704
    %v413 = vmax.f32 %v408, %v412
    %v414 = vsub.f32 %v408, %v413
    %v415 = vmul.f32 %v414, 1.442695
    %v416 = vpow.pop %v415
    %v417 = vsub.f32 %v412, %v413
    %v418 = vmul.f32 %v417, 1.442695
    %v419 = vpow.pop %v418
    %v420 = vadd.f32 %v416, %v419
    %v421 = vlog2.pop %v420
    %v422 = vmul.f32 %v421, 0.6931472
    %v423 = vadd.f32 %v413, %v422
    %v424 = vsub.f32 %v423, %v403
    %v425 = vmul.f32 %v424, 0.0625
    %v426 = vadd.f32 %v342, %v425
    %v427 = vsub.f32 %v416, %v419
    %v428 = vrcp.pop %v420
    %v429 = vmul.f32 %v420, %v428
    %v430 = vsub.f32 1.0, %v429
    %v431 = vmul.f32 %v428, %v430
    %v432 = vadd.f32 %v428, %v431
    %vm433 = vweird.f32 %v420
    %vm434 = vweird.f32 %v428
    %vm435 = vmor %vm433, %vm434
    %v436 = vsel %vm435, %v428, %v432
    %v437 = vand.u32 2147483647, %v420
    %vm438 = vcmp.eq.f32.partialorder %v437, 8.507059e+37
    %v439 = vand.u32 %v420, 2147483648
    %v440 = vor.u32 1.1754944e-38, %v439
    %v441 = vsel %vm438, %v440, %v436
    %v442 = vmul.f32 %v427, %v441
    %v443 = vmul.f32 %v376, -0.6875
    %v444 = vmul.f32 %v377, -0.6875
    %v445 = vmul.f32 %v378, -0.6875
    %v446 = vmul.f32 %v379, -0.6875
    %v447 = vmul.f32 %v442, 2.0
    %v448 = vsub.f32 %v376, %v447
    %v449 = vsub.f32 %v377, %v447
    %v450 = vsub.f32 %v378, %v447
    %v451 = vsub.f32 %v379, %v447
    %v452 = vmul.f32 %v448, 1.25
    %v453 = vmul.f32 %v449, 1.25
    %v454 = vmul.f32 %v450, 1.25
    %v455 = vmul.f32 %v451, 1.25
    %v456 = vsub.f32 %v443, %v452
    %v457 = vsub.f32 %v444, %v453
    %v458 = vsub.f32 %v445, %v454
    %v459 = vsub.f32 %v446, %v455
    %v460 = vmul.f32 %v456, 0.05
    %v461 = vmul.f32 %v457, 0.05
    %v462 = vmul.f32 %v458, 0.05
    %v463 = vmul.f32 %v459, 0.05
    %v464 = vadd.f32 %v376, %v460
    %v465 = vadd.f32 %v377, %v461
    %v466 = vadd.f32 %v378, %v462
    %v467 = vadd.f32 %v379, %v463
    %v468 = vadd.f32 %v464, %v465
    %v469 = vadd.f32 %v468, %v466
    %v470 = vadd.f32 %v469, %v467
    %v471 = vrot.slane %v470, 4
    %v472 = vadd.f32 %v470, %v471
    %v473 = vrot.slane %v472, 2
    %v474 = vadd.f32 %v472, %v473
    %v475 = vrot.slane %v474, 1
    %v476 = vadd.f32 %v474, %v475
    %v477 = vmul.f32 %v464, %v464
    %v478 = vmul.f32 %v465, %v465
    %v479 = vmul.f32 %v466, %v466
    %v480 = vmul.f32 %v467, %v467
    %v481 = vadd.f32 %v477, %v478
    %v482 = vadd.f32 %v481, %v479
    %v483 = vadd.f32 %v482, %v480
    %v484 = vrot.slane %v483, 4
    %v485 = vadd.f32 %v483, %v484
    %v486 = vrot.slane %v485, 2
    %v487 = vadd.f32 %v485, %v486
    %v488 = vrot.slane %v487, 1
    %v489 = vadd.f32 %v487, %v488
    %v490 = vmul.f32 %v489, -0.5
    %v491 = vadd.f32 %v490, -29.406033
    %v492 = vmul.f32 %v476, 4.0
    %v493 = vsub.f32 %v489, %v492
    %v494 = vadd.f32 %v493, 128.0
    %v495 = vmul.f32 %v494, -2.0
    %v496 = vadd.f32 %v495, -7.9184704
    %v497 = vadd.f32 %v489, %v492
    %v498 = vadd.f32 %v497, 128.0
    %v499 = vmul.f32 %v498, -2.0
    %v500 = vadd.f32 %v499, -7.9184704
    %v501 = vmax.f32 %v496, %v500
    %v502 = vsub.f32 %v496, %v501
    %v503 = vmul.f32 %v502, 1.442695
    %v504 = vpow.pop %v503
    %v505 = vsub.f32 %v500, %v501
    %v506 = vmul.f32 %v505, 1.442695
    %v507 = vpow.pop %v506
    %v508 = vadd.f32 %v504, %v507
    %v509 = vlog2.pop %v508
    %v510 = vmul.f32 %v509, 0.6931472
    %v511 = vadd.f32 %v501, %v510
    %v512 = vsub.f32 %v511, %v491
    %v513 = vmul.f32 %v512, 0.0625
    %v514 = vadd.f32 %v426, %v513
    %v515 = vsub.f32 %v504, %v507
    %v516 = vrcp.pop %v508
    %v517 = vmul.f32 %v508, %v516
    %v518 = vsub.f32 1.0, %v517
    %v519 = vmul.f32 %v516, %v518
    %v520 = vadd.f32 %v516, %v519
    %vm521 = vweird.f32 %v508
    %vm522 = vweird.f32 %v516
    %vm523 = vmor %vm521, %vm522
    %v524 = vsel %vm523, %v516, %v520
    %v525 = vand.u32 2147483647, %v508
    %vm526 = vcmp.eq.f32.partialorder %v525, 8.507059e+37
    %v527 = vand.u32 %v508, 2147483648
    %v528 = vor.u32 1.1754944e-38, %v527
    %v529 = vsel %vm526, %v528, %v524
    %v530 = vmul.f32 %v515, %v529
    %v531 = vmul.f32 %v464, -0.625
    %v532 = vmul.f32 %v465, -0.625
    %v533 = vmul.f32 %v466, -0.625
    %v534 = vmul.f32 %v467, -0.625
    %v535 = vmul.f32 %v530, 2.0
    %v536 = vsub.f32 %v464, %v535
    %v537 = vsub.f32 %v465, %v535
    %v538 = vsub.f32 %v466, %v535
    %v539 = vsub.f32 %v467, %v535
    %v540 = vmul.f32 %v536, 1.5
    %v541 = vmul.f32 %v537, 1.5
    %v542 = vmul.f32 %v538, 1.5
    %v543 = vmul.f32 %v539, 1.5
    %v544 = vsub.f32 %v531, %v540
    %v545 = vsub.f32 %v532, %v541
    %v546 = vsub.f32 %v533, %v542
    %v547 = vsub.f32 %v534, %v543
    %v548 = vmul.f32 %v544, 0.05
    %v549 = vmul.f32 %v545, 0.05
    %v550 = vmul.f32 %v546, 0.05
    %v551 = vmul.f32 %v547, 0.05
    %v552 = vadd.f32 %v464, %v548
    %v553 = vadd.f32 %v465, %v549
    %v554 = vadd.f32 %v466, %v550
    %v555 = vadd.f32 %v467, %v551
    %v556 = vadd.f32 %v552, %v553
    %v557 = vadd.f32 %v556, %v554
    %v558 = vadd.f32 %v557, %v555
    %v559 = vrot.slane %v558, 4
    %v560 = vadd.f32 %v558, %v559
    %v561 = vrot.slane %v560, 2
    %v562 = vadd.f32 %v560, %v561
    %v563 = vrot.slane %v562, 1
    %v564 = vadd.f32 %v562, %v563
    %v565 = vmul.f32 %v552, %v552
    %v566 = vmul.f32 %v553, %v553
    %v567 = vmul.f32 %v554, %v554
    %v568 = vmul.f32 %v555, %v555
    %v569 = vadd.f32 %v565, %v566
    %v570 = vadd.f32 %v569, %v567
    %v571 = vadd.f32 %v570, %v568
    %v572 = vrot.slane %v571, 4
    %v573 = vadd.f32 %v571, %v572
    %v574 = vrot.slane %v573, 2
    %v575 = vadd.f32 %v573, %v574
    %v576 = vrot.slane %v575, 1
    %v577 = vadd.f32 %v575, %v576
    %v578 = vmul.f32 %v577, -0.5
    %v579 = vadd.f32 %v578, -29.406033
    %v580 = vmul.f32 %v564, 4.0
    %v581 = vsub.f32 %v577, %v580
    %v582 = vadd.f32 %v581, 128.0
    %v583 = vmul.f32 %v582, -2.0
    %v584 = vadd.f32 %v583, -7.9184704
    %v585 = vadd.f32 %v577, %v580
    %v586 = vadd.f32 %v585, 128.0
    %v587 = vmul.f32 %v586, -2.0
    %v588 = vadd.f32 %v587, -7.9184704
    %v589 = vmax.f32 %v584, %v588
    %v590 = vsub.f32 %v584, %v589
    %v591 = vmul.f32 %v590, 1.442695
    %v592 = vpow.pop %v591
    %v593 = vsub.f32 %v588, %v589
    %v594 = vmul.f32 %v593, 1.442695
    %v595 = vpow.pop %v594
    %v596 = vadd.f32 %v592, %v595
    %v597 = vlog2.pop %v596
    %v598 = vmul.f32 %v597, 0.6931472
    %v599 = vadd.f32 %v589, %v598
    %v600 = vsub.f32 %v599, %v579
    %v601 = vmul.f32 %v600, 0.0625
    %v602 = vadd.f32 %v514, %v601
    %v603 = vsub.f32 %v592, %v595
    %v604 = vrcp.pop %v596
    %v605 = vmul.f32 %v596, %v604
    %v606 = vsub.f32 1.0, %v605
    %v607 = vmul.f32 %v604, %v606
    %v608 = vadd.f32 %v604, %v607
    %vm609 = vweird.f32 %v596
    %vm610 = vweird.f32 %v604
    %vm611 = vmor %vm609, %vm610
    %v612 = vsel %vm611, %v604, %v608
    %v613 = vand.u32 2147483647, %v596
    %vm614 = vcmp.eq.f32.partialorder %v613, 8.507059e+37
    %v615 = vand.u32 %v596, 2147483648
    %v616 = vor.u32 1.1754944e-38, %v615
    %v617 = vsel %vm614, %v616, %v612
    %v618 = vmul.f32 %v603, %v617
    %v619 = vmul.f32 %v552, -0.5625
    %v620 = vmul.f32 %v553, -0.5625
    %v621 = vmul.f32 %v554, -0.5625
    %v622 = vmul.f32 %v555, -0.5625
    %v623 = vmul.f32 %v618, 2.0
    %v624 = vsub.f32 %v552, %v623
    %v625 = vsub.f32 %v553, %v623
    %v626 = vsub.f32 %v554, %v623
    %v627 = vsub.f32 %v555, %v623
    %v628 = vmul.f32 %v624, 1.75
    %v629 = vmul.f32 %v625, 1.75
    %v630 = vmul.f32 %v626, 1.75
    %v631 = vmul.f32 %v627, 1.75
    %v632 = vsub.f32 %v619, %v628
    %v633 = vsub.f32 %v620, %v629
    %v634 = vsub.f32 %v621, %v630
    %v635 = vsub.f32 %v622, %v631
    %v636 = vmul.f32 %v632, 0.05
    %v637 = vmul.f32 %v633, 0.05
    %v638 = vmul.f32 %v634, 0.05
    %v639 = vmul.f32 %v635, 0.05
    %v640 = vadd.f32 %v552, %v636
    %v641 = vadd.f32 %v553, %v637
    %v642 = vadd.f32 %v554, %v638
    %v643 = vadd.f32 %v555, %v639
    %v644 = vadd.f32 %v640, %v641
    %v645 = vadd.f32 %v644, %v642
    %v646 = vadd.f32 %v645, %v643
    %v647 = vrot.slane %v646, 4
    %v648 = vadd.f32 %v646, %v647
    %v649 = vrot.slane %v648, 2
    %v650 = vadd.f32 %v648, %v649
    %v651 = vrot.slane %v650, 1
    %v652 = vadd.f32 %v650, %v651
    %v653 = vmul.f32 %v640, %v640
    %v654 = vmul.f32 %v641, %v641
    %v655 = vmul.f32 %v642, %v642
    %v656 = vmul.f32 %v643, %v643
    %v657 = vadd.f32 %v653, %v654
    %v658 = vadd.f32 %v657, %v655
    %v659 = vadd.f32 %v658, %v656
    %v660 = vrot.slane %v659, 4
    %v661 = vadd.f32 %v659, %v660
    %v662 = vrot.slane %v661, 2
    %v663 = vadd.f32 %v661, %v662
    %v664 = vrot.slane %v663, 1
    %v665 = vadd.f32 %v663, %v664
    %v666 = vmul.f32 %v665, -0.5
    %v667 = vadd.f32 %v666, -29.406033
    %v668 = vmul.f32 %v652, 4.0
    %v669 = vsub.f32 %v665, %v668
    %v670 = vadd.f32 %v669, 128.0
    %v671 = vmul.f32 %v670, -2.0
    %v672 = vadd.f32 %v671, -7.9184704
    %v673 = vadd.f32 %v665, %v668
    %v674 = vadd.f32 %v673, 128.0
    %v675 = vmul.f32 %v674, -2.0
    %v676 = vadd.f32 %v675, -7.9184704
    %v677 = vmax.f32 %v672, %v676
    %v678 = vsub.f32 %v672, %v677
    %v679 = vmul.f32 %v678, 1.442695
    %v680 = vpow.pop %v679
    %v681 = vsub.f32 %v676, %v677
    %v682 = vmul.f32 %v681, 1.442695
    %v683 = vpow.pop %v682
    %v684 = vadd.f32 %v680, %v683
    %v685 = vlog2.pop %v684
    %v686 = vmul.f32 %v685, 0.6931472
    %v687 = vadd.f32 %v677, %v686
    %v688 = vsub.f32 %v687, %v667
    %v689 = vmul.f32 %v688, 0.0625
    %v690 = vadd.f32 %v602, %v689
    %v691 = vsub.f32 %v680, %v683
    %v692 = vrcp.pop %v684
    %v693 = vmul.f32 %v684, %v692
    %v694 = vsub.f32 1.0, %v693
    %v695 = vmul.f32 %v692, %v694
    %v696 = vadd.f32 %v692, %v695
    %vm697 = vweird.f32 %v684
    %vm698 = vweird.f32 %v692
    %vm699 = vmor %vm697, %vm698
    %v700 = vsel %vm699, %v692, %v696
    %v701 = vand.u32 2147483647, %v684
    %vm702 = vcmp.eq.f32.partialorder %v701, 8.507059e+37
    %v703 = vand.u32 %v684, 2147483648
    %v704 = vor.u32 1.1754944e-38, %v703
    %v705 = vsel %vm702, %v704, %v700
    %v706 = vmul.f32 %v691, %v705
    %v707 = vmul.f32 %v640, -0.5
    %v708 = vmul.f32 %v641, -0.5
    %v709 = vmul.f32 %v642, -0.5
    %v710 = vmul.f32 %v643, -0.5
    %v711 = vmul.f32 %v706, 2.0
    %v712 = vsub.f32 %v640, %v711
    %v713 = vsub.f32 %v641, %v711
    %v714 = vsub.f32 %v642, %v711
    %v715 = vsub.f32 %v643, %v711
    %v716 = vmul.f32 %v712, 2.0
    %v717 = vmul.f32 %v713, 2.0
    %v718 = vmul.f32 %v714, 2.0
    %v719 = vmul.f32 %v715, 2.0
    %v720 = vsub.f32 %v707, %v716
    %v721 = vsub.f32 %v708, %v717
    %v722 = vsub.f32 %v709, %v718
    %v723 = vsub.f32 %v710, %v719
    %v724 = vmul.f32 %v720, 0.05
    %v725 = vmul.f32 %v721, 0.05
    %v726 = vmul.f32 %v722, 0.05
    %v727 = vmul.f32 %v723, 0.05
    %v728 = vadd.f32 %v640, %v724
    %v729 = vadd.f32 %v641, %v725
    %v730 = vadd.f32 %v642, %v726
    %v731 = vadd.f32 %v643, %v727
    %v732 = vadd.f32 %v728, %v729
    %v733 = vadd.f32 %v732, %v730
    %v734 = vadd.f32 %v733, %v731
    %v735 = vrot.slane %v734, 4
    %v736 = vadd.f32 %v734, %v735
    %v737 = vrot.slane %v736, 2
    %v738 = vadd.f32 %v736, %v737
    %v739 = vrot.slane %v738, 1
    %v740 = vadd.f32 %v738, %v739
    %v741 = vmul.f32 %v728, %v728
    %v742 = vmul.f32 %v729, %v729
    %v743 = vmul.f32 %v730, %v730
    %v744 = vmul.f32 %v731, %v731
    %v745 = vadd.f32 %v741, %v742
    %v746 = vadd.f32 %v745, %v743
    %v747 = vadd.f32 %v746, %v744
    %v748 = vrot.slane %v747, 4
    %v749 = vadd.f32 %v747, %v748
    %v750 = vrot.slane %v749, 2
    %v751 = vadd.f32 %v749, %v750
    %v752 = vrot.slane %v751, 1
    %v753 = vadd.f32 %v751, %v752
    %v754 = vmul.f32 %v753, -0.5
    %v755 = vadd.f32 %v754, -29.406033
    %v756 = vmul.f32 %v740, 4.0
    %v757 = vsub.f32 %v753, %v756
    %v758 = vadd.f32 %v757, 128.0
    %v759 = vmul.f32 %v758, -2.0
    %v760 = vadd.f32 %v759, -7.9184704
    %v761 = vadd.f32 %v753, %v756
    %v762 = vadd.f32 %v761, 128.0
    %v763 = vmul.f32 %v762, -2.0
    %v764 = vadd.f32 %v763, -7.9184704
    %v765 = vmax.f32 %v760, %v764
    %v766 = vsub.f32 %v760, %v765
    %v767 = vmul.f32 %v766, 1.442695
    %v768 = vpow.pop %v767
    %v769 = vsub.f32 %v764, %v765
    %v770 = vmul.f32 %v769, 1.442695
    %v771 = vpow.pop %v770
    %v772 = vadd.f32 %v768, %v771
    %v773 = vlog2.pop %v772
    %v774 = vmul.f32 %v773, 0.6931472
    %v775 = vadd.f32 %v765, %v774
    %v776 = vsub.f32 %v775, %v755
    %v777 = vmul.f32 %v776, 0.0625
    %v778 = vadd.f32 %v690, %v777
    %v779 = vsub.f32 %v768, %v771
    %v780 = vrcp.pop %v772
    %v781 = vmul.f32 %v772, %v780
    %v782 = vsub.f32 1.0, %v781
    %v783 = vmul.f32 %v780, %v782
    %v784 = vadd.f32 %v780, %v783
    %vm785 = vweird.f32 %v772
    %vm786 = vweird.f32 %v780
    %vm787 = vmor %vm785, %vm786
    %v788 = vsel %vm787, %v780, %v784
    %v789 = vand.u32 2147483647, %v772
    %vm790 = vcmp.eq.f32.partialorder %v789, 8.507059e+37
    %v791 = vand.u32 %v772, 2147483648
    %v792 = vor.u32 1.1754944e-38, %v791
    %v793 = vsel %vm790, %v792, %v788
    %v794 = vmul.f32 %v779, %v793
    %v795 = vmul.f32 %v728, -0.4375
    %v796 = vmul.f32 %v729, -0.4375
    %v797 = vmul.f32 %v730, -0.4375
    %v798 = vmul.f32 %v731, -0.4375
    %v799 = vmul.f32 %v794, 2.0
    %v800 = vsub.f32 %v728, %v799
    %v801 = vsub.f32 %v729, %v799
    %v802 = vsub.f32 %v730, %v799
    %v803 = vsub.f32 %v731, %v799
    %v804 = vmul.f32 %v800, 2.25
    %v805 = vmul.f32 %v801, 2.25
    %v806 = vmul.f32 %v802, 2.25
    %v807 = vmul.f32 %v803, 2.25
    %v808 = vsub.f32 %v795, %v804
    %v809 = vsub.f32 %v796, %v805
    %v810 = vsub.f32 %v797, %v806
    %v811 = vsub.f32 %v798, %v807
    %v812 = vmul.f32 %v808, 0.05
    %v813 = vmul.f32 %v809, 0.05
    %v814 = vmul.f32 %v810, 0.05
    %v815 = vmul.f32 %v811, 0.05
    %v816 = vadd.f32 %v728, %v812
    %v817 = vadd.f32 %v729, %v813
    %v818 = vadd.f32 %v730, %v814
    %v819 = vadd.f32 %v731, %v815
    %v820 = vadd.f32 %v816, %v817
    %v821 = vadd.f32 %v820, %v818
    %v822 = vadd.f32 %v821, %v819
    %v823 = vrot.slane %v822, 4
    %v824 = vadd.f32 %v822, %v823
    %v825 = vrot.slane %v824, 2
    %v826 = vadd.f32 %v824, %v825
    %v827 = vrot.slane %v826, 1
    %v828 = vadd.f32 %v826, %v827
    %v829 = vmul.f32 %v816, %v816
    %v830 = vmul.f32 %v817, %v817
    %v831 = vmul.f32 %v818, %v818
    %v832 = vmul.f32 %v819, %v819
    %v833 = vadd.f32 %v829, %v830
    %v834 = vadd.f32 %v833, %v831
    %v835 = vadd.f32 %v834, %v832
    %v836 = vrot.slane %v835, 4
    %v837 = vadd.f32 %v835, %v836
    %v838 = vrot.slane %v837, 2
    %v839 = vadd.f32 %v837, %v838
    %v840 = vrot.slane %v839, 1
    %v841 = vadd.f32 %v839, %v840
    %v842 = vmul.f32 %v841, -0.5
    %v843 = vadd.f32 %v842, -29.406033
    %v844 = vmul.f32 %v828, 4.0
    %v845 = vsub.f32 %v841, %v844
    %v846 = vadd.f32 %v845, 128.0
    %v847 = vmul.f32 %v846, -2.0
    %v848 = vadd.f32 %v847, -7.9184704
    %v849 = vadd.f32 %v841, %v844
    %v850 = vadd.f32 %v849, 128.0
    %v851 = vmul.f32 %v850, -2.0
    %v852 = vadd.f32 %v851, -7.9184704
    %v853 = vmax.f32 %v848, %v852
    %v854 = vsub.f32 %v848, %v853
    %v855 = vmul.f32 %v854, 1.442695
    %v856 = vpow.pop %v855
    %v857 = vsub.f32 %v852, %v853
    %v858 = vmul.f32 %v857, 1.442695
    %v859 = vpow.pop %v858
    %v860 = vadd.f32 %v856, %v859
    %v861 = vlog2.pop %v860
    %v862 = vmul.f32 %v861, 0.6931472
    %v863 = vadd.f32 %v853, %v862
    %v864 = vsub.f32 %v863, %v843
    %v865 = vmul.f32 %v864, 0.0625
    %v866 = vadd.f32 %v778, %v865
    %v867 = vsub.f32 %v856, %v859
    %v868 = vrcp.pop %v860
    %v869 = vmul.f32 %v860, %v868
    %v870 = vsub.f32 1.0, %v869
    %v871 = vmul.f32 %v868, %v870
    %v872 = vadd.f32 %v868, %v871
    %vm873 = vweird.f32 %v860
    %vm874 = vweird.f32 %v868
    %vm875 = vmor %vm873, %vm874
    %v876 = vsel %vm875, %v868, %v872
    %v877 = vand.u32 2147483647, %v860
    %vm878 = vcmp.eq.f32.partialorder %v877, 8.507059e+37
    %v879 = vand.u32 %v860, 2147483648
    %v880 = vor.u32 1.1754944e-38, %v879
    %v881 = vsel %vm878, %v880, %v876
    %v882 = vmul.f32 %v867, %v881
    %v883 = vmul.f32 %v816, -0.375
    %v884 = vmul.f32 %v817, -0.375
    %v885 = vmul.f32 %v818, -0.375
    %v886 = vmul.f32 %v819, -0.375
    %v887 = vmul.f32 %v882, 2.0
    %v888 = vsub.f32 %v816, %v887
    %v889 = vsub.f32 %v817, %v887
    %v890 = vsub.f32 %v818, %v887
    %v891 = vsub.f32 %v819, %v887
    %v892 = vmul.f32 %v888, 2.5
    %v893 = vmul.f32 %v889, 2.5
    %v894 = vmul.f32 %v890, 2.5
    %v895 = vmul.f32 %v891, 2.5
    %v896 = vsub.f32 %v883, %v892
    %v897 = vsub.f32 %v884, %v893
    %v898 = vsub.f32 %v885, %v894
    %v899 = vsub.f32 %v886, %v895
    %v900 = vmul.f32 %v896, 0.05
    %v901 = vmul.f32 %v897, 0.05
    %v902 = vmul.f32 %v898, 0.05
    %v903 = vmul.f32 %v899, 0.05
    %v904 = vadd.f32 %v816, %v900
    %v905 = vadd.f32 %v817, %v901
    %v906 = vadd.f32 %v818, %v902
    %v907 = vadd.f32 %v819, %v903
    %v908 = vadd.f32 %v904, %v905
    %v909 = vadd.f32 %v908, %v906
    %v910 = vadd.f32 %v909, %v907
    %v911 = vrot.slane %v910, 4
    %v912 = vadd.f32 %v910, %v911
    %v913 = vrot.slane %v912, 2
    %v914 = vadd.f32 %v912, %v913
    %v915 = vrot.slane %v914, 1
    %v916 = vadd.f32 %v914, %v915
    %v917 = vmul.f32 %v904, %v904
    %v918 = vmul.f32 %v905, %v905
    %v919 = vmul.f32 %v906, %v906
    %v920 = vmul.f32 %v907, %v907
    %v921 = vadd.f32 %v917, %v918
    %v922 = vadd.f32 %v921, %v919
    %v923 = vadd.f32 %v922, %v920
    %v924 = vrot.slane %v923, 4
    %v925 = vadd.f32 %v923, %v924
    %v926 = vrot.slane %v925, 2
    %v927 = vadd.f32 %v925, %v926
    %v928 = vrot.slane %v927, 1
    %v929 = vadd.f32 %v927, %v928
    %v930 = vmul.f32 %v929, -0.5
    %v931 = vadd.f32 %v930, -29.406033
    %v932 = vmul.f32 %v916, 4.0
    %v933 = vsub.f32 %v929, %v932
    %v934 = vadd.f32 %v933, 128.0
    %v935 = vmul.f32 %v934, -2.0
    %v936 = vadd.f32 %v935, -7.9184704
    %v937 = vadd.f32 %v929, %v932
    %v938 = vadd.f32 %v937, 128.0
    %v939 = vmul.f32 %v938, -2.0
    %v940 = vadd.f32 %v939, -7.9184704
    %v941 = vmax.f32 %v936, %v940
    %v942 = vsub.f32 %v936, %v941
    %v943 = vmul.f32 %v942, 1.442695
    %v944 = vpow.pop %v943
    %v945 = vsub.f32 %v940, %v941
    %v946 = vmul.f32 %v945, 1.442695
    %v947 = vpow.pop %v946
    %v948 = vadd.f32 %v944, %v947
    %v949 = vlog2.pop %v948
    %v950 = vmul.f32 %v949, 0.6931472
    %v951 = vadd.f32 %v941, %v950
    %v952 = vsub.f32 %v951, %v931
    %v953 = vmul.f32 %v952, 0.0625
    %v954 = vadd.f32 %v866, %v953
    %v955 = vsub.f32 %v944, %v947
    %v956 = vrcp.pop %v948
    %v957 = vmul.f32 %v948, %v956
    %v958 = vsub.f32 1.0, %v957
    %v959 = vmul.f32 %v956, %v958
    %v960 = vadd.f32 %v956, %v959
    %vm961 = vweird.f32 %v948
    %vm962 = vweird.f32 %v956
    %vm963 = vmor %vm961, %vm962
    %v964 = vsel %vm963, %v956, %v960
    %v965 = vand.u32 2147483647, %v948
    %vm966 = vcmp.eq.f32.partialorder %v965, 8.507059e+37
    %v967 = vand.u32 %v948, 2147483648
    %v968 = vor.u32 1.1754944e-38, %v967
    %v969 = vsel %vm966, %v968, %v964
    %v970 = vmul.f32 %v955, %v969
    %v971 = vmul.f32 %v904, -0.3125
    %v972 = vmul.f32 %v905, -0.3125
    %v973 = vmul.f32 %v906, -0.3125
    %v974 = vmul.f32 %v907, -0.3125
    %v975 = vmul.f32 %v970, 2.0
    %v976 = vsub.f32 %v904, %v975
    %v977 = vsub.f32 %v905, %v975
    %v978 = vsub.f32 %v906, %v975
    %v979 = vsub.f32 %v907, %v975
    %v980 = vmul.f32 %v976, 2.75
    %v981 = vmul.f32 %v977, 2.75
    %v982 = vmul.f32 %v978, 2.75
    %v983 = vmul.f32 %v979, 2.75
    %v984 = vsub.f32 %v971, %v980
    %v985 = vsub.f32 %v972, %v981
    %v986 = vsub.f32 %v973, %v982
    %v987 = vsub.f32 %v974, %v983
    %v988 = vmul.f32 %v984, 0.05
    %v989 = vmul.f32 %v985, 0.05
    %v990 = vmul.f32 %v986, 0.05
    %v991 = vmul.f32 %v987, 0.05
    %v992 = vadd.f32 %v904, %v988
    %v993 = vadd.f32 %v905, %v989
    %v994 = vadd.f32 %v906, %v990
    %v995 = vadd.f32 %v907, %v991
    %v996 = vadd.f32 %v992, %v993
    %v997 = vadd.f32 %v996, %v994
    %v998 = vadd.f32 %v997, %v995
    %v999 = vrot.slane %v998, 4
    %v1000 = vadd.f32 %v998, %v999
    %v1001 = vrot.slane %v1000, 2
    %v1002 = vadd.f32 %v1000, %v1001
    %v1003 = vrot.slane %v1002, 1
    %v1004 = vadd.f32 %v1002, %v1003
    %v1005 = vmul.f32 %v992, %v992
    %v1006 = vmul.f32 %v993, %v993
    %v1007 = vmul.f32 %v994, %v994
    %v1008 = vmul.f32 %v995, %v995
    %v1009 = vadd.f32 %v1005, %v1006
    %v1010 = vadd.f32 %v1009, %v1007
    %v1011 = vadd.f32 %v1010, %v1008
    %v1012 = vrot.slane %v1011, 4
    %v1013 = vadd.f32 %v1011, %v1012
    %v1014 = vrot.slane %v1013, 2
    %v1015 = vadd.f32 %v1013, %v1014
    %v1016 = vrot.slane %v1015, 1
    %v1017 = vadd.f32 %v1015, %v1016
    %v1018 = vmul.f32 %v1017, -0.5
    %v1019 = vadd.f32 %v1018, -29.406033
    %v1020 = vmul.f32 %v1004, 4.0
    %v1021 = vsub.f32 %v1017, %v1020
    %v1022 = vadd.f32 %v1021, 128.0
    %v1023 = vmul.f32 %v1022, -2.0
    %v1024 = vadd.f32 %v1023, -7.9184704
    %v1025 = vadd.f32 %v1017, %v1020
    %v1026 = vadd.f32 %v1025, 128.0
    %v1027 = vmul.f32 %v1026, -2.0
    %v1028 = vadd.f32 %v1027, -7.9184704
    %v1029 = vmax.f32 %v1024, %v1028
    %v1030 = vsub.f32 %v1024, %v1029
    %v1031 = vmul.f32 %v1030, 1.442695
    %v1032 = vpow.pop %v1031
    %v1033 = vsub.f32 %v1028, %v1029
    %v1034 = vmul.f32 %v1033, 1.442695
    %v1035 = vpow.pop %v1034
    %v1036 = vadd.f32 %v1032, %v1035
    %v1037 = vlog2.pop %v1036
    %v1038 = vmul.f32 %v1037, 0.6931472
    %v1039 = vadd.f32 %v1029, %v1038
    %v1040 = vsub.f32 %v1039, %v1019
    %v1041 = vmul.f32 %v1040, 0.0625
    %v1042 = vadd.f32 %v954, %v1041
    %v1043 = vsub.f32 %v1032, %v1035
    %v1044 = vrcp.pop %v1036
    %v1045 = vmul.f32 %v1036, %v1044
    %v1046 = vsub.f32 1.0, %v1045
    %v1047 = vmul.f32 %v1044, %v1046
    %v1048 = vadd.f32 %v1044, %v1047
    %vm1049 = vweird.f32 %v1036
    %vm1050 = vweird.f32 %v1044
    %vm1051 = vmor %vm1049, %vm1050
    %v1052 = vsel %vm1051, %v1044, %v1048
    %v1053 = vand.u32 2147483647, %v1036
    %vm1054 = vcmp.eq.f32.partialorder %v1053, 8.507059e+37
    %v1055 = vand.u32 %v1036, 2147483648
    %v1056 = vor.u32 1.1754944e-38, %v1055
    %v1057 = vsel %vm1054, %v1056, %v1052
    %v1058 = vmul.f32 %v1043, %v1057
    %v1059 = vmul.f32 %v992, -0.25
    %v1060 = vmul.f32 %v993, -0.25
    %v1061 = vmul.f32 %v994, -0.25
    %v1062 = vmul.f32 %v995, -0.25
    %v1063 = vmul.f32 %v1058, 2.0
    %v1064 = vsub.f32 %v992, %v1063
    %v1065 = vsub.f32 %v993, %v1063
    %v1066 = vsub.f32 %v994, %v1063
    %v1067 = vsub.f32 %v995, %v1063
    %v1068 = vmul.f32 %v1064, 3.0
    %v1069 = vmul.f32 %v1065, 3.0
    %v1070 = vmul.f32 %v1066, 3.0
    %v1071 = vmul.f32 %v1067, 3.0
    %v1072 = vsub.f32 %v1059, %v1068
    %v1073 = vsub.f32 %v1060, %v1069
    %v1074 = vsub.f32 %v1061, %v1070
    %v1075 = vsub.f32 %v1062, %v1071
    %v1076 = vmul.f32 %v1072, 0.05
    %v1077 = vmul.f32 %v1073, 0.05
    %v1078 = vmul.f32 %v1074, 0.05
    %v1079 = vmul.f32 %v1075, 0.05
    %v1080 = vadd.f32 %v992, %v1076
    %v1081 = vadd.f32 %v993, %v1077
    %v1082 = vadd.f32 %v994, %v1078
    %v1083 = vadd.f32 %v995, %v1079
    %v1084 = vadd.f32 %v1080, %v1081
    %v1085 = vadd.f32 %v1084, %v1082
    %v1086 = vadd.f32 %v1085, %v1083
    %v1087 = vrot.slane %v1086, 4
    %v1088 = vadd.f32 %v1086, %v1087
    %v1089 = vrot.slane %v1088, 2
    %v1090 = vadd.f32 %v1088, %v1089
    %v1091 = vrot.slane %v1090, 1
    %v1092 = vadd.f32 %v1090, %v1091
    %v1093 = vmul.f32 %v1080, %v1080
    %v1094 = vmul.f32 %v1081, %v1081
    %v1095 = vmul.f32 %v1082, %v1082
    %v1096 = vmul.f32 %v1083, %v1083
    %v1097 = vadd.f32 %v1093, %v1094
    %v1098 = vadd.f32 %v1097, %v1095
    %v1099 = vadd.f32 %v1098, %v1096
    %v1100 = vrot.slane %v1099, 4
    %v1101 = vadd.f32 %v1099, %v1100
    %v1102 = vrot.slane %v1101, 2
    %v1103 = vadd.f32 %v1101, %v1102
    %v1104 = vrot.slane %v1103, 1
    %v1105 = vadd.f32 %v1103, %v1104
    %v1106 = vmul.f32 %v1105, -0.5
    %v1107 = vadd.f32 %v1106, -29.406033
    %v1108 = vmul.f32 %v1092, 4.0
    %v1109 = vsub.f32 %v1105, %v1108
    %v1110 = vadd.f32 %v1109, 128.0
    %v1111 = vmul.f32 %v1110, -2.0
    %v1112 = vadd.f32 %v1111, -7.9184704
    %v1113 = vadd.f32 %v1105, %v1108
    %v1114 = vadd.f32 %v1113, 128.0
    %v1115 = vmul.f32 %v1114, -2.0
    %v1116 = vadd.f32 %v1115, -7.9184704
    %v1117 = vmax.f32 %v1112, %v1116
    %v1118 = vsub.f32 %v1112, %v1117
    %v1119 = vmul.f32 %v1118, 1.442695
    %v1120 = vpow.pop %v1119
    %v1121 = vsub.f32 %v1116, %v1117
    %v1122 = vmul.f32 %v1121, 1.442695
    %v1123 = vpow.pop %v1122
    %v1124 = vadd.f32 %v1120, %v1123
    %v1125 = vlog2.pop %v1124
    %v1126 = vmul.f32 %v1125, 0.6931472
    %v1127 = vadd.f32 %v1117, %v1126
    %v1128 = vsub.f32 %v1127, %v1107
    %v1129 = vmul.f32 %v1128, 0.0625
    %v1130 = vadd.f32 %v1042, %v1129
    %v1131 = vsub.f32 %v1120, %v1123
    %v1132 = vrcp.pop %v1124
    %v1133 = vmul.f32 %v1124, %v1132
    %v1134 = vsub.f32 1.0, %v1133
    %v1135 = vmul.f32 %v1132, %v1134
    %v1136 = vadd.f32 %v1132, %v1135
    %vm1137 = vweird.f32 %v1124
    %vm1138 = vweird.f32 %v1132
    %vm1139 = vmor %vm1137, %vm1138
    %v1140 = vsel %vm1139, %v1132, %v1136
    %v1141 = vand.u32 2147483647, %v1124
    %vm1142 = vcmp.eq.f32.partialorder %v1141, 8.507059e+37
    %v1143 = vand.u32 %v1124, 2147483648
    %v1144 = vor.u32 1.1754944e-38, %v1143
    %v1145 = vsel %vm1142, %v1144, %v1140
    %v1146 = vmul.f32 %v1131, %v1145
    %v1147 = vmul.f32 %v1080, -0.1875
    %v1148 = vmul.f32 %v1081, -0.1875
    %v1149 = vmul.f32 %v1082, -0.1875
    %v1150 = vmul.f32 %v1083, -0.1875
    %v1151 = vmul.f32 %v1146, 2.0
    %v1152 = vsub.f32 %v1080, %v1151
    %v1153 = vsub.f32 %v1081, %v1151
    %v1154 = vsub.f32 %v1082, %v1151
    %v1155 = vsub.f32 %v1083, %v1151
    %v1156 = vmul.f32 %v1152, 3.25
    %v1157 = vmul.f32 %v1153, 3.25
    %v1158 = vmul.f32 %v1154, 3.25
    %v1159 = vmul.f32 %v1155, 3.25
    %v1160 = vsub.f32 %v1147, %v1156
    %v1161 = vsub.f32 %v1148, %v1157
    %v1162 = vsub.f32 %v1149, %v1158
    %v1163 = vsub.f32 %v1150, %v1159
    %v1164 = vmul.f32 %v1160, 0.05
    %v1165 = vmul.f32 %v1161, 0.05
    %v1166 = vmul.f32 %v1162, 0.05
    %v1167 = vmul.f32 %v1163, 0.05
    %v1168 = vadd.f32 %v1080, %v1164
    %v1169 = vadd.f32 %v1081, %v1165
    %v1170 = vadd.f32 %v1082, %v1166
    %v1171 = vadd.f32 %v1083, %v1167
    %v1172 = vadd.f32 %v1168, %v1169
    %v1173 = vadd.f32 %v1172, %v1170
    %v1174 = vadd.f32 %v1173, %v1171
    %v1175 = vrot.slane %v1174, 4
    %v1176 = vadd.f32 %v1174, %v1175
    %v1177 = vrot.slane %v1176, 2
    %v1178 = vadd.f32 %v1176, %v1177
    %v1179 = vrot.slane %v1178, 1
    %v1180 = vadd.f32 %v1178, %v1179
    %v1181 = vmul.f32 %v1168, %v1168
    %v1182 = vmul.f32 %v1169, %v1169
    %v1183 = vmul.f32 %v1170, %v1170
    %v1184 = vmul.f32 %v1171, %v1171
    %v1185 = vadd.f32 %v1181, %v1182
    %v1186 = vadd.f32 %v1185, %v1183
    %v1187 = vadd.f32 %v1186, %v1184
    %v1188 = vrot.slane %v1187, 4
    %v1189 = vadd.f32 %v1187, %v1188
    %v1190 = vrot.slane %v1189, 2
    %v1191 = vadd.f32 %v1189, %v1190
    %v1192 = vrot.slane %v1191, 1
    %v1193 = vadd.f32 %v1191, %v1192
    %v1194 = vmul.f32 %v1193, -0.5
    %v1195 = vadd.f32 %v1194, -29.406033
    %v1196 = vmul.f32 %v1180, 4.0
    %v1197 = vsub.f32 %v1193, %v1196
    %v1198 = vadd.f32 %v1197, 128.0
    %v1199 = vmul.f32 %v1198, -2.0
    %v1200 = vadd.f32 %v1199, -7.9184704
    %v1201 = vadd.f32 %v1193, %v1196
    %v1202 = vadd.f32 %v1201, 128.0
    %v1203 = vmul.f32 %v1202, -2.0
    %v1204 = vadd.f32 %v1203, -7.9184704
    %v1205 = vmax.f32 %v1200, %v1204
    %v1206 = vsub.f32 %v1200, %v1205
    %v1207 = vmul.f32 %v1206, 1.442695
    %v1208 = vpow.pop %v1207
    %v1209 = vsub.f32 %v1204, %v1205
    %v1210 = vmul.f32 %v1209, 1.442695
    %v1211 = vpow.pop %v1210
    %v1212 = vadd.f32 %v1208, %v1211
    %v1213 = vlog2.pop %v1212
    %v1214 = vmul.f32 %v1213, 0.6931472
    %v1215 = vadd.f32 %v1205, %v1214
    %v1216 = vsub.f32 %v1215, %v1195
    %v1217 = vmul.f32 %v1216, 0.0625
    %v1218 = vadd.f32 %v1130, %v1217
    %v1219 = vsub.f32 %v1208, %v1211
    %v1220 = vrcp.pop %v1212
    %v1221 = vmul.f32 %v1212, %v1220
    %v1222 = vsub.f32 1.0, %v1221
    %v1223 = vmul.f32 %v1220, %v1222
    %v1224 = vadd.f32 %v1220, %v1223
    %vm1225 = vweird.f32 %v1212
    %vm1226 = vweird.f32 %v1220
    %vm1227 = vmor %vm1225, %vm1226
    %v1228 = vsel %vm1227, %v1220, %v1224
    %v1229 = vand.u32 2147483647, %v1212
    %vm1230 = vcmp.eq.f32.partialorder %v1229, 8.507059e+37
    %v1231 = vand.u32 %v1212, 2147483648
    %v1232 = vor.u32 1.1754944e-38, %v1231
    %v1233 = vsel %vm1230, %v1232, %v1228
    %v1234 = vmul.f32 %v1219, %v1233
    %v1235 = vmul.f32 %v1168, -0.125
    %v1236 = vmul.f32 %v1169, -0.125
    %v1237 = vmul.f32 %v1170, -0.125
    %v1238 = vmul.f32 %v1171, -0.125
    %v1239 = vmul.f32 %v1234, 2.0
    %v1240 = vsub.f32 %v1168, %v1239
    %v1241 = vsub.f32 %v1169, %v1239
    %v1242 = vsub.f32 %v1170, %v1239
    %v1243 = vsub.f32 %v1171, %v1239
    %v1244 = vmul.f32 %v1240, 3.5
    %v1245 = vmul.f32 %v1241, 3.5
    %v1246 = vmul.f32 %v1242, 3.5
    %v1247 = vmul.f32 %v1243, 3.5
    %v1248 = vsub.f32 %v1235, %v1244
    %v1249 = vsub.f32 %v1236, %v1245
    %v1250 = vsub.f32 %v1237, %v1246
    %v1251 = vsub.f32 %v1238, %v1247
    %v1252 = vmul.f32 %v1248, 0.05
    %v1253 = vmul.f32 %v1249, 0.05
    %v1254 = vmul.f32 %v1250, 0.05
    %v1255 = vmul.f32 %v1251, 0.05
    %v1256 = vadd.f32 %v1168, %v1252
    %v1257 = vadd.f32 %v1169, %v1253
    %v1258 = vadd.f32 %v1170, %v1254
    %v1259 = vadd.f32 %v1171, %v1255
    %v1260 = vadd.f32 %v1256, %v1257
    %v1261 = vadd.f32 %v1260, %v1258
    %v1262 = vadd.f32 %v1261, %v1259
    %v1263 = vrot.slane %v1262, 4
    %v1264 = vadd.f32 %v1262, %v1263
    %v1265 = vrot.slane %v1264, 2
    %v1266 = vadd.f32 %v1264, %v1265
    %v1267 = vrot.slane %v1266, 1
    %v1268 = vadd.f32 %v1266, %v1267
    %v1269 = vmul.f32 %v1256, %v1256
    %v1270 = vmul.f32 %v1257, %v1257
    %v1271 = vmul.f32 %v1258, %v1258
    %v1272 = vmul.f32 %v1259, %v1259
    %v1273 = vadd.f32 %v1269, %v1270
    %v1274 = vadd.f32 %v1273, %v1271
    %v1275 = vadd.f32 %v1274, %v1272
    %v1276 = vrot.slane %v1275, 4
    %v1277 = vadd.f32 %v1275, %v1276
    %v1278 = vrot.slane %v1277, 2
    %v1279 = vadd.f32 %v1277, %v1278
    %v1280 = vrot.slane %v1279, 1
    %v1281 = vadd.f32 %v1279, %v1280
    %v1282 = vmul.f32 %v1281, -0.5
    %v1283 = vadd.f32 %v1282, -29.406033
    %v1284 = vmul.f32 %v1268, 4.0
    %v1285 = vsub.f32 %v1281, %v1284
    %v1286 = vadd.f32 %v1285, 128.0
    %v1287 = vmul.f32 %v1286, -2.0
    %v1288 = vadd.f32 %v1287, -7.9184704
    %v1289 = vadd.f32 %v1281, %v1284
    %v1290 = vadd.f32 %v1289, 128.0
    %v1291 = vmul.f32 %v1290, -2.0
    %v1292 = vadd.f32 %v1291, -7.9184704
    %v1293 = vmax.f32 %v1288, %v1292
    %v1294 = vsub.f32 %v1288, %v1293
    %v1295 = vmul.f32 %v1294, 1.442695
    %v1296 = vpow.pop %v1295
    %v1297 = vsub.f32 %v1292, %v1293
    %v1298 = vmul.f32 %v1297, 1.442695
    %v1299 = vpow.pop %v1298
    %v1300 = vadd.f32 %v1296, %v1299
    %v1301 = vlog2.pop %v1300
    %v1302 = vmul.f32 %v1301, 0.6931472
    %v1303 = vadd.f32 %v1293, %v1302
    %v1304 = vsub.f32 %v1303, %v1283
    %v1305 = vmul.f32 %v1304, 0.0625
    %v1306 = vadd.f32 %v1218, %v1305
    %v1307 = vsub.f32 %v1296, %v1299
    %v1308 = vrcp.pop %v1300
    %v1309 = vmul.f32 %v1300, %v1308
    %v1310 = vsub.f32 1.0, %v1309
    %v1311 = vmul.f32 %v1308, %v1310
    %v1312 = vadd.f32 %v1308, %v1311
    %vm1313 = vweird.f32 %v1300
    %vm1314 = vweird.f32 %v1308
    %vm1315 = vmor %vm1313, %vm1314
    %v1316 = vsel %vm1315, %v1308, %v1312
    %v1317 = vand.u32 2147483647, %v1300
    %vm1318 = vcmp.eq.f32.partialorder %v1317, 8.507059e+37
    %v1319 = vand.u32 %v1300, 2147483648
    %v1320 = vor.u32 1.1754944e-38, %v1319
    %v1321 = vsel %vm1318, %v1320, %v1316
    %v1322 = vmul.f32 %v1307, %v1321
    %v1323 = vmul.f32 %v1256, -0.0625
    %v1324 = vmul.f32 %v1257, -0.0625
    %v1325 = vmul.f32 %v1258, -0.0625
    %v1326 = vmul.f32 %v1259, -0.0625
    %v1327 = vmul.f32 %v1322, 2.0
    %v1328 = vsub.f32 %v1256, %v1327
    %v1329 = vsub.f32 %v1257, %v1327
    %v1330 = vsub.f32 %v1258, %v1327
    %v1331 = vsub.f32 %v1259, %v1327
    %v1332 = vmul.f32 %v1328, 3.75
    %v1333 = vmul.f32 %v1329, 3.75
    %v1334 = vmul.f32 %v1330, 3.75
    %v1335 = vmul.f32 %v1331, 3.75
    %v1336 = vsub.f32 %v1323, %v1332
    %v1337 = vsub.f32 %v1324, %v1333
    %v1338 = vsub.f32 %v1325, %v1334
    %v1339 = vsub.f32 %v1326, %v1335
    %v1340 = vmul.f32 %v1336, 0.05
    %v1341 = vmul.f32 %v1337, 0.05
    %v1342 = vmul.f32 %v1338, 0.05
    %v1343 = vmul.f32 %v1339, 0.05
    %v1344 = vadd.f32 %v1256, %v1340
    %v1345 = vadd.f32 %v1257, %v1341
    %v1346 = vadd.f32 %v1258, %v1342
    %v1347 = vadd.f32 %v1259, %v1343
    %v1348 = vadd.f32 %v1344, %v1345
    %v1349 = vadd.f32 %v1348, %v1346
    %v1350 = vadd.f32 %v1349, %v1347
    %v1351 = vrot.slane %v1350, 4
    %v1352 = vadd.f32 %v1350, %v1351
    %v1353 = vrot.slane %v1352, 2
    %v1354 = vadd.f32 %v1352, %v1353
    %v1355 = vrot.slane %v1354, 1
    %v1356 = vadd.f32 %v1354, %v1355
    %v1357 = vmul.f32 %v1344, %v1344
    %v1358 = vmul.f32 %v1345, %v1345
    %v1359 = vmul.f32 %v1346, %v1346
    %v1360 = vmul.f32 %v1347, %v1347
    %v1361 = vadd.f32 %v1357, %v1358
    %v1362 = vadd.f32 %v1361, %v1359
    %v1363 = vadd.f32 %v1362, %v1360
    %v1364 = vrot.slane %v1363, 4
    %v1365 = vadd.f32 %v1363, %v1364
    %v1366 = vrot.slane %v1365, 2
    %v1367 = vadd.f32 %v1365, %v1366
    %v1368 = vrot.slane %v1367, 1
    %v1369 = vadd.f32 %v1367, %v1368
    %v1370 = vmul.f32 %v1369, -0.5
    %v1371 = vadd.f32 %v1370, -29.406033
    %v1372 = vmul.f32 %v1356, 4.0
    %v1373 = vsub.f32 %v1369, %v1372
    %v1374 = vadd.f32 %v1373, 128.0
    %v1375 = vmul.f32 %v1374, -2.0
    %v1376 = vadd.f32 %v1375, -7.9184704
    %v1377 = vadd.f32 %v1369, %v1372
    %v1378 = vadd.f32 %v1377, 128.0
    %v1379 = vmul.f32 %v1378, -2.0
    %v1380 = vadd.f32 %v1379, -7.9184704
    %v1381 = vmax.f32 %v1376, %v1380
    %v1382 = vsub.f32 %v1376, %v1381
    %v1383 = vmul.f32 %v1382, 1.442695
    %v1384 = vpow.pop %v1383
    %v1385 = vsub.f32 %v1380, %v1381
    %v1386 = vmul.f32 %v1385, 1.442695
    %v1387 = vpow.pop %v1386
    %v1388 = vadd.f32 %v1384, %v1387
    %v1389 = vlog2.pop %v1388
    %v1390 = vmul.f32 %v1389, 0.6931472
    %v1391 = vadd.f32 %v1381, %v1390
    %v1392 = vsub.f32 %v1391, %v1371
    %v1393 = vmul.f32 %v1392, 0.0625
    %v1394 = vadd.f32 %v1306, %v1393
    %v1395 = vsub.f32 %v1384, %v1387
    %v1396 = vrcp.pop %v1388
    %v1397 = vmul.f32 %v1388, %v1396
    %v1398 = vsub.f32 1.0, %v1397
    %v1399 = vmul.f32 %v1396, %v1398
    %v1400 = vadd.f32 %v1396, %v1399
    %vm1401 = vweird.f32 %v1388
    %vm1402 = vweird.f32 %v1396
    %vm1403 = vmor %vm1401, %vm1402
    %v1404 = vsel %vm1403, %v1396, %v1400
    %v1405 = vand.u32 2147483647, %v1388
    %vm1406 = vcmp.eq.f32.partialorder %v1405, 8.507059e+37
    %v1407 = vand.u32 %v1388, 2147483648
    %v1408 = vor.u32 1.1754944e-38, %v1407
    %v1409 = vsel %vm1406, %v1408, %v1404
    %v1410 = vmul.f32 %v1395, %v1409
    %v1411 = vmul.f32 %v1344, 0.0
    %v1412 = vmul.f32 %v1345, 0.0
    %v1413 = vmul.f32 %v1346, 0.0
    %v1414 = vmul.f32 %v1347, 0.0
    %v1415 = vmul.f32 %v1410, 2.0
    %v1416 = vsub.f32 %v1344, %v1415
    %v1417 = vsub.f32 %v1345, %v1415
    %v1418 = vsub.f32 %v1346, %v1415
    %v1419 = vsub.f32 %v1347, %v1415
    %v1420 = vmul.f32 %v1416, 4.0
    %v1421 = vmul.f32 %v1417, 4.0
    %v1422 = vmul.f32 %v1418, 4.0
    %v1423 = vmul.f32 %v1419, 4.0
    %v1424 = vsub.f32 %v1411, %v1420
    %v1425 = vsub.f32 %v1412, %v1421
    %v1426 = vsub.f32 %v1413, %v1422
    %v1427 = vsub.f32 %v1414, %v1423
    %v1428 = vmul.f32 %v1424, 0.05
    %v1429 = vmul.f32 %v1425, 0.05
    %v1430 = vmul.f32 %v1426, 0.05
    %v1431 = vmul.f32 %v1427, 0.05
    %v1432 = vadd.f32 %v1344, %v1428
    %v1433 = vadd.f32 %v1345, %v1429
    %v1434 = vadd.f32 %v1346, %v1430
    %v1435 = vadd.f32 %v1347, %v1431
    %1436 = vst [vmem:[#allocation5] sm:$0x1] %v1394
    %1437 = vst [vmem:[#allocation6] sm:$0xff] %v1432
    %1438 = vst [vmem:[#allocation6 + $0x8] sm:$0xff] %v1433
    %1439 = vst [vmem:[#allocation6 + $0x10] sm:$0xff] %v1434
    %1440 = vst [vmem:[#allocation6 + $0x18] sm:$0xff] %v1435
    // Predicated region
    $region10: #{tpu_custom_call.1} parent=1 // pred_check
      _
    $region11: #{tpu_custom_call.1} parent=1 // pred_check_branch
      %1442 = sbr.rel (0) target = $region13
    $region12: #{tpu_custom_call.1} parent=1 // pred_region
      %1444 = vsyncadd [#allocation4], 0
      %s1446 = sshll.u32 [#allocation5], 4
      %s1447 = int_to_ptr.vmem [resolvable:$true] %s1446
      %s1448 = sshll.u32 %s1, 4
      %s1449 = int_to_ptr.hbm [resolvable:$true] %s1448
      %1451 = dma.vmem_to_hbm [thread:$0]  %s1447, 16, %s1449, [#allocation4]
    $region13: #{tpu_custom_call.1} parent=1 // pred_fallthru
      _
    // Predicated region
    $region14: #{tpu_custom_call.1} parent=1 // pred_check
      _
    $region15: #{tpu_custom_call.1} parent=1 // pred_check_branch
      %1453 = sbr.rel (0) target = $region17
    $region16: #{tpu_custom_call.1} parent=1 // pred_region
      %1455 = vsyncadd [#allocation7], 0
      %s1456 = sshll.u32 [#allocation6], 4
      %s1457 = int_to_ptr.vmem [resolvable:$true] %s1456
      %s1458 = sshll.u32 %s2, 4
      %s1459 = int_to_ptr.hbm [resolvable:$true] %s1458
      %1464 = dma.vmem_to_hbm [thread:$0]  %s1457, 512, %s1459, [#allocation7], 128, 128, 8
    $region17: #{tpu_custom_call.1} parent=1 // pred_fallthru
      _
    // Predicated region
    $region18: #{tpu_custom_call.1} parent=1 // pred_check
      _
    $region19: #{tpu_custom_call.1} parent=1 // pred_check_branch
      %1466 = sbr.rel (0) target = $region21
    $region20: #{tpu_custom_call.1} parent=1 // pred_region
      %1468 = dma.done [#allocation4], 16
    $region21: #{tpu_custom_call.1} parent=1 // pred_fallthru
      _
    // Predicated region
    $region22: #{tpu_custom_call.1} parent=1 // pred_check
      _
    $region23: #{tpu_custom_call.1} parent=1 // pred_check_branch
      %1470 = sbr.rel (0) target = $region25
    $region24: #{tpu_custom_call.1} parent=1 // pred_region
      %1472 = dma.done [#allocation7], 512
    $region25: #{tpu_custom_call.1} parent=1 // pred_fallthru
      _
    %1473 = vsyncpa [#allocation3], 1
    %1474 = vsyncpa [#allocation4], 1
    %1475 = vsyncpa [#allocation7], 1

</llo_original>
